<compile_context>
chip_gen: v6e
topology: v6e:2x2x1
jax: 0.10.0
libtpu: 0.0.40
codegen_flags: <defaults>
</compile_context>

<pallas_src>
import functools

import jax
import jax.numpy as jnp
from jax.experimental import pallas as pl
from jax.experimental.pallas import tpu as pltpu

KERNEL_SIZE = 7
PAD = KERNEL_SIZE // 2
MIB = 1024 * 1024


def _spatial_attention_kernel(w_ref, x_ref, o_ref, scr_ref, *, W):
    # w_ref  : (2*K*K,) f32 in SMEM (flattened conv weight, [cin, kh, kw] order)
    # x_ref  : (TB, C, H*W) block in VMEM (lane-dense layout)
    # o_ref  : (TB, C, H*W) block in VMEM
    # scr_ref: (3, TB, H*W + 2*PAD*W) f32 VMEM scratch
    #          row 0: halo-padded avg map, row 1: halo-padded max map,
    #          row 2: per-kh partial sum (padded so the row shift zero-fills).
    K = KERNEL_SIZE
    TB, C, HW = x_ref.shape
    halo = PAD * W

    # ---- Channel pooling (mean + max over dim=1), chunked over C so no
    # full-block f32 temporary is materialized (frees VMEM for bigger blocks).
    if C <= 8:
        cc = C
    else:
        cc = max(8, ((1 * MIB) // (TB * HW * 4)) // 8 * 8)  # ~<=1 MiB f32 chunk
        cc = min(cc, C)
    csum = None
    cmax = None
    for c0 in range(0, C, cc):
        n = min(cc, C - c0)
        xc = x_ref[:, c0:c0 + n, :].astype(jnp.float32)      # (TB, n, HW)
        s = jnp.sum(xc, axis=1)
        m = jnp.max(xc, axis=1)
        csum = s if csum is None else csum + s
        cmax = m if cmax is None else jnp.maximum(cmax, m)
    avg = csum * jnp.float32(1.0 / C)                        # (TB, HW) f32
    mxv = cmax                                               # (TB, HW) f32

    # ---- Stage pooled maps into a halo-padded scratch; zero only the halo
    # borders (interior is fully rewritten).  Zero halos give exact zero
    # padding for the conv row shifts.
    zero_halo = jnp.zeros((3, TB, halo), jnp.float32)
    scr_ref[:, :, pl.ds(0, halo)] = zero_halo
    scr_ref[:, :, pl.ds(halo + HW, halo)] = zero_halo
    scr_ref[0, :, pl.ds(halo, HW)] = avg
    scr_ref[1, :, pl.ds(halo, HW)] = mxv

    # Column index of every flattened pixel, for masking kw shifts that would
    # otherwise pull pixels across row boundaries of the (H, W) map.
    col = jax.lax.broadcasted_iota(jnp.int32, (TB, HW), 1) % W

    # ---- Factorized 7x7 conv: 7 column (kw)-shifted copies per pooled map,
    # each reused across all 7 kh taps (14 window reads instead of 98).
    acc_kh = [jnp.zeros((TB, HW), jnp.float32) for _ in range(K)]
    for kw in range(K):
        dw = kw - PAD
        sa = scr_ref[0, :, pl.ds(halo + dw, HW)]
        sm = scr_ref[1, :, pl.ds(halo + dw, HW)]
        if dw != 0:
            cmask = (col >= -dw) & (col < W - dw)
            sa = jnp.where(cmask, sa, 0.0)
            sm = jnp.where(cmask, sm, 0.0)
        for kh in range(K):
            w_avg = w_ref[kh * K + kw]            # weight[0, 0, kh, kw]
            w_max = w_ref[K * K + kh * K + kw]    # weight[0, 1, kh, kw]
            acc_kh[kh] = acc_kh[kh] + w_avg * sa + w_max * sm

    # kh (row) shifts: shift each per-kh partial sum by kh-PAD rows via a
    # halo-padded scratch window read (zero halo handles the borders exactly).
    acc = jnp.zeros((TB, HW), jnp.float32)
    for kh in range(K):
        dh = kh - PAD
        if dh == 0:
            acc = acc + acc_kh[kh]
        else:
            scr_ref[2, :, pl.ds(halo, HW)] = acc_kh[kh]
            acc = acc + scr_ref[2, :, pl.ds(halo + dh * W, HW)]

    # ---- Sigmoid attention map, then scale the input chunk-by-chunk so the
    # temporaries stay bounded and all stores are lane-dense.
    attn = jax.nn.sigmoid(acc).astype(o_ref.dtype)           # (TB, HW)
    for c0 in range(0, C, cc):
        n = min(cc, C - c0)
        o_ref[:, c0:c0 + n, :] = (
            x_ref[:, c0:c0 + n, :] * attn[:, None, :]
        ).astype(o_ref.dtype)


def _tpu_config():
    """Per-generation tiling / VMEM policy (queried once, outside jit)."""
    vmem_bytes = None
    try:
        vmem_bytes = getattr(pltpu.get_tpu_info(), "vmem_capacity_bytes", None)
    except Exception:
        vmem_bytes = None
    if vmem_bytes is None:
        kind = ""
        try:
            kind = jax.devices()[0].device_kind.lower()
        except Exception:
            pass
        if "v5" in kind or "v6" in kind:
            vmem_bytes = 128 * MIB
        elif "v2" in kind or "v3" in kind:
            vmem_bytes = 16 * MIB
        else:
            vmem_bytes = 64 * MIB          # conservative (v7x-like) default
    if vmem_bytes >= 100 * MIB:
        # v5e / v6e / v5p: 128 MiB VMEM, single TensorCore per device.
        return {"target_block": 8 * MIB, "vmem_limit": 64 * MIB, "n_cores": 1}
    if vmem_bytes >= 48 * MIB:
        # v7x-like: 64 MiB VMEM, 2 TensorCores share the "parallel" grid axis.
        return {"target_block": 4 * MIB, "vmem_limit": 48 * MIB, "n_cores": 2}
    # Older / small-VMEM parts: stay well inside the physical limit.
    return {"target_block": 2 * MIB, "vmem_limit": max(8 * MIB, vmem_bytes // 2),
            "n_cores": 1}


def _pick_batch_block(batch, C, HW, W, itemsize, *,
                      target_block_bytes, vmem_budget_bytes, n_cores):
    """Largest batch-block (divisor of `batch`) whose streamed block is near the
    per-generation target and whose total VMEM footprint (double-buffered in+out
    blocks + f32 map temporaries + scratch) fits the budget.  On multi-core
    parts, prefer a grid count that is a multiple of n_cores (ideally >= 2 per
    core) so no TensorCore idles and each core can pipeline its DMA."""
    per_batch_block = C * HW * itemsize
    per_batch_map = HW * 4                       # one f32 (H*W) map per batch row
    scratch_per_batch = 3 * (HW + 2 * PAD * W) * 4
    TEMP_MAPS = 16                               # live f32 maps in the conv phase
    CHUNK_ALLOW = 2 * MIB                        # bounded f32 pooling/scale chunks

    def vmem_est(tb):
        return (4 * tb * per_batch_block         # double-buffered in + out blocks
                + tb * per_batch_map * TEMP_MAPS
                + tb * scratch_per_batch
                + CHUNK_ALLOW)

    divisors = [d for d in range(1, batch + 1) if batch % d == 0]
    fitting = [d for d in divisors
               if d * per_batch_block <= target_block_bytes
               and vmem_est(d) <= vmem_budget_bytes]
    if not fitting:
        # TODO(synk): H-tiled (PAD-row halo) fallback for per-batch slabs that
        # are themselves too large for VMEM; tb=1 may not fit in that regime.
        fitting = [1]
    tb = max(fitting)
    if n_cores > 1:
        even = [d for d in fitting if (batch // d) % n_cores == 0]
        pref = [d for d in even if batch // d >= 2 * n_cores]
        if pref:
            tb = max(pref)
        elif even:
            tb = max(even)
    return tb


@functools.partial(
    jax.jit, static_argnames=("target_block", "vmem_limit", "n_cores", "donate_x"))
def _spatial_attention_impl(x, conv_weight, *, target_block, vmem_limit, n_cores,
                            donate_x):
    B, C, H, W = x.shape
    HW = H * W
    w_flat = conv_weight.reshape(-1).astype(jnp.float32)    # (2*K*K,)
    x_flat = x.reshape(B, C, HW)                            # lane-dense view (free)

    tb = _pick_batch_block(
        B, C, HW, W, x.dtype.itemsize,
        target_block_bytes=target_block,
        vmem_budget_bytes=vmem_limit - 4 * MIB,             # headroom for Mosaic
        n_cores=n_cores)

    kernel = functools.partial(_spatial_attention_kernel, W=W)
    out = pl.pallas_call(
        kernel,
        out_shape=jax.ShapeDtypeStruct((B, C, HW), x.dtype),
        grid=(B // tb,),
        in_specs=[
            pl.BlockSpec(memory_space=pltpu.MemorySpace.SMEM),   # conv weight
            pl.BlockSpec((tb, C, HW), lambda b: (b, 0, 0)),      # x block
        ],
        out_specs=pl.BlockSpec((tb, C, HW), lambda b: (b, 0, 0)),
        scratch_shapes=[pltpu.VMEM((3, tb, HW + 2 * PAD * W), jnp.float32)],
        # Aliasing only pays off if the caller also donates x to jit; default off.
        input_output_aliases=({1: 0} if donate_x else {}),
        compiler_params=pltpu.CompilerParams(
            dimension_semantics=("parallel",),
            vmem_limit_bytes=vmem_limit,
        ),
    )(w_flat, x_flat)
    return out.reshape(B, C, H, W)


def spatial_attention(x, conv_weight, donate_x=False):
    """x: (B, C, H, W); conv_weight: (1, 2, K, K) (PyTorch Conv2d layout)."""
    cfg = _tpu_config()
    return _spatial_attention_impl(
        x, conv_weight,
        target_block=cfg["target_block"],
        vmem_limit=cfg["vmem_limit"],
        n_cores=cfg["n_cores"],
        donate_x=donate_x)


def _reference(x, conv_weight):
    """Pure-JAX reference mirroring the PyTorch forward."""
    xf = x.astype(jnp.float32)
    avg_out = jnp.mean(xf, axis=1, keepdims=True)
    max_out = jnp.max(xf, axis=1, keepdims=True)
    concat = jnp.concatenate([avg_out, max_out], axis=1)        # (B, 2, H, W)
    out = jax.lax.conv_general_dilated(
        concat, conv_weight.astype(jnp.float32),
        window_strides=(1, 1), padding=[(PAD, PAD), (PAD, PAD)],
        dimension_numbers=("NCHW", "OIHW", "NCHW"))
    out = jax.nn.sigmoid(out)                                   # (B, 1, H, W)
    return (xf * out).astype(x.dtype)


if __name__ == "__main__":
    key = jax.random.PRNGKey(0)
    kx, kw = jax.random.split(key)

    B, C, H, W = 2, 4, 16, 16
    x = jax.random.normal(kx, (B, C, H, W), dtype=jnp.float32)
    conv_weight = 0.1 * jax.random.normal(kw, (1, 2, KERNEL_SIZE, KERNEL_SIZE),
                                          dtype=jnp.float32)

    out = jax.block_until_ready(spatial_attention(x, conv_weight))
    ref = _reference(x, conv_weight)

    assert out.shape == (B, C, H, W)
    assert jnp.allclose(out, ref, atol=1e-5, rtol=1e-5), "mismatch vs reference"

    print("KERNEL_OK")
</pallas_src>

<mosaic_0001>
module attributes {stable_mosaic.version = 11 : i64} {
  func.func @_spatial_attention_kernel(%arg0: i32, %arg1: memref<98xf32, #tpu.memory_space<smem>>, %arg2: memref<1x4x256xf32, #tpu.memory_space<vmem>>, %arg3: memref<1x4x256xf32, #tpu.memory_space<vmem>>, %arg4: memref<3x1x352xf32, #tpu.memory_space<vmem>>) attributes {dimension_semantics = [#tpu.dimension_semantics<parallel>], iteration_bounds = array<i64: 2>, scalar_prefetch = 0 : i64, scratch_operands = 1 : i64, tpu.core_type = #tpu.core_type<tc>, window_params = [{transform_indices = @transform_0, window_bounds = array<i64: 98>}, {transform_indices = @transform_1, window_bounds = array<i64: 1, 4, 256>}, {transform_indices = @transform_2, window_bounds = array<i64: 1, 4, 256>}]} {
    %c0 = arith.constant 0 : index
    %c0_0 = arith.constant 0 : index
    %c0_1 = arith.constant 0 : index
    %0 = vector.load %arg2[%c0, %c0_0, %c0_1] : memref<1x4x256xf32, #tpu.memory_space<vmem>>, vector<1x4x256xf32>
    %cst = arith.constant dense<0.000000e+00> : vector<1x256xf32>
    %1 = vector.multi_reduction <add>, %0, %cst [1] : vector<1x4x256xf32> to vector<1x256xf32>
    %cst_2 = arith.constant dense<0xFF800000> : vector<1x256xf32>
    %2 = vector.multi_reduction <maximumf>, %0, %cst_2 [1] : vector<1x4x256xf32> to vector<1x256xf32>
    %cst_3 = arith.constant 2.500000e-01 : f32
    %3 = vector.broadcast %cst_3 : f32 to vector<1x256xf32>
    %4 = arith.mulf %1, %3 : vector<1x256xf32>
    %cst_4 = arith.constant 0.000000e+00 : f32
    %5 = vector.broadcast %cst_4 : f32 to vector<3x1x48xf32>
    %c0_5 = arith.constant 0 : index
    %c0_6 = arith.constant 0 : index
    %c0_7 = arith.constant 0 : index
    %6 = vector.load %arg4[%c0_5, %c0_6, %c0_7] : memref<3x1x352xf32, #tpu.memory_space<vmem>>, vector<3x1x48xf32>
    tpu.vector_store %arg4[%c0_5, %c0_6, %c0_7], %5 {strides = array<i32>} : memref<3x1x352xf32, #tpu.memory_space<vmem>>, vector<3x1x48xf32>,
    %c0_8 = arith.constant 0 : index
    %c0_9 = arith.constant 0 : index
    %c304 = arith.constant 304 : index
    %7 = vector.load %arg4[%c0_8, %c0_9, %c304] : memref<3x1x352xf32, #tpu.memory_space<vmem>>, vector<3x1x48xf32>
    tpu.vector_store %arg4[%c0_8, %c0_9, %c304], %5 {strides = array<i32>} : memref<3x1x352xf32, #tpu.memory_space<vmem>>, vector<3x1x48xf32>,
    %c0_10 = arith.constant 0 : index
    %c0_11 = arith.constant 0 : index
    %c48 = arith.constant 48 : index
    %8 = vector.load %arg4[%c0_10, %c0_11, %c48] : memref<3x1x352xf32, #tpu.memory_space<vmem>>, vector<1x1x256xf32>
    %9 = vector.shape_cast %8 : vector<1x1x256xf32> to vector<1x256xf32>
    %10 = vector.shape_cast %4 : vector<1x256xf32> to vector<1x1x256xf32>
    tpu.vector_store %arg4[%c0_10, %c0_11, %c48], %10 {strides = array<i32>} : memref<3x1x352xf32, #tpu.memory_space<vmem>>, vector<1x1x256xf32>,
    %c1 = arith.constant 1 : index
    %c0_12 = arith.constant 0 : index
    %c48_13 = arith.constant 48 : index
    %11 = vector.load %arg4[%c1, %c0_12, %c48_13] : memref<3x1x352xf32, #tpu.memory_space<vmem>>, vector<1x1x256xf32>
    %12 = vector.shape_cast %11 : vector<1x1x256xf32> to vector<1x256xf32>
    %13 = vector.shape_cast %2 : vector<1x256xf32> to vector<1x1x256xf32>
    tpu.vector_store %arg4[%c1, %c0_12, %c48_13], %13 {strides = array<i32>} : memref<3x1x352xf32, #tpu.memory_space<vmem>>, vector<1x1x256xf32>,
    %14 = tpu.iota {dimensions = array<i32: 1>} : vector<1x256xi32>
    %c16_i32 = arith.constant 16 : i32
    %c0_i32 = arith.constant 0 : i32
    %15 = arith.cmpi eq, %c16_i32, %c0_i32 : i32
    %c1_i32 = arith.constant 1 : i32
    %16 = arith.select %15, %c1_i32, %c16_i32 : i32
    %17 = vector.broadcast %16 : i32 to vector<1x256xi32>
    %18 = arith.remsi %14, %17 : vector<1x256xi32>
    %c0_i32_14 = arith.constant 0 : i32
    %19 = vector.broadcast %c0_i32_14 : i32 to vector<1x256xi32>
    %20 = arith.cmpi ne, %18, %19 : vector<1x256xi32>
    %c0_i32_15 = arith.constant 0 : i32
    %21 = vector.broadcast %c0_i32_15 : i32 to vector<1x256xi32>
    %22 = arith.cmpi slt, %18, %21 : vector<1x256xi32>
    %c0_i32_16 = arith.constant 0 : i32
    %23 = arith.cmpi slt, %16, %c0_i32_16 : i32
    %24 = vector.broadcast %23 : i1 to vector<1x256xi1>
    %25 = vector.broadcast %24 : vector<1x256xi1> to vector<1x256xi1>
    %26 = arith.xori %22, %25 : vector<1x256xi1>
    %27 = arith.andi %26, %20 : vector<1x256xi1>
    %28 = vector.broadcast %16 : i32 to vector<1x256xi32>
    %29 = arith.addi %18, %28 : vector<1x256xi32>
    %30 = arith.select %27, %29, %18 : vector<1x256xi1>, vector<1x256xi32>
    %cst_17 = arith.constant 0.000000e+00 : f32
    %31 = vector.broadcast %cst_17 : f32 to vector<1x256xf32>
    %cst_18 = arith.constant 0.000000e+00 : f32
    %32 = vector.broadcast %cst_18 : f32 to vector<1x256xf32>
    %cst_19 = arith.constant 0.000000e+00 : f32
    %33 = vector.broadcast %cst_19 : f32 to vector<1x256xf32>
    %cst_20 = arith.constant 0.000000e+00 : f32
    %34 = vector.broadcast %cst_20 : f32 to vector<1x256xf32>
    %cst_21 = arith.constant 0.000000e+00 : f32
    %35 = vector.broadcast %cst_21 : f32 to vector<1x256xf32>
    %cst_22 = arith.constant 0.000000e+00 : f32
    %36 = vector.broadcast %cst_22 : f32 to vector<1x256xf32>
    %cst_23 = arith.constant 0.000000e+00 : f32
    %37 = vector.broadcast %cst_23 : f32 to vector<1x256xf32>
    %c0_24 = arith.constant 0 : index
    %c0_25 = arith.constant 0 : index
    %c45 = arith.constant 45 : index
    %38 = vector.load %arg4[%c0_24, %c0_25, %c45] : memref<3x1x352xf32, #tpu.memory_space<vmem>>, vector<1x1x256xf32>
    %39 = vector.shape_cast %38 : vector<1x1x256xf32> to vector<1x256xf32>
    %c1_26 = arith.constant 1 : index
    %c0_27 = arith.constant 0 : index
    %c45_28 = arith.constant 45 : index
    %40 = vector.load %arg4[%c1_26, %c0_27, %c45_28] : memref<3x1x352xf32, #tpu.memory_space<vmem>>, vector<1x1x256xf32>
    %41 = vector.shape_cast %40 : vector<1x1x256xf32> to vector<1x256xf32>
    %c3_i32 = arith.constant 3 : i32
    %42 = vector.broadcast %c3_i32 : i32 to vector<1x256xi32>
    %43 = arith.cmpi sge, %30, %42 : vector<1x256xi32>
    %c19_i32 = arith.constant 19 : i32
    %44 = vector.broadcast %c19_i32 : i32 to vector<1x256xi32>
    %45 = arith.cmpi slt, %30, %44 : vector<1x256xi32>
    %46 = arith.andi %43, %45 : vector<1x256xi1>
    %cst_29 = arith.constant 0.000000e+00 : f32
    %47 = vector.broadcast %cst_29 : f32 to vector<1x256xf32>
    %48 = arith.select %46, %39, %47 : vector<1x256xi1>, vector<1x256xf32>
    %cst_30 = arith.constant 0.000000e+00 : f32
    %49 = vector.broadcast %cst_30 : f32 to vector<1x256xf32>
    %50 = arith.select %46, %41, %49 : vector<1x256xi1>, vector<1x256xf32>
    %c0_31 = arith.constant 0 : index
    %51 = memref.load %arg1[%c0_31] : memref<98xf32, #tpu.memory_space<smem>>
    %c49 = arith.constant 49 : index
    %52 = memref.load %arg1[%c49] : memref<98xf32, #tpu.memory_space<smem>>
    %53 = vector.broadcast %51 : f32 to vector<1x256xf32>
    %54 = arith.mulf %53, %48 : vector<1x256xf32>
    %55 = arith.addf %31, %54 : vector<1x256xf32>
    %56 = vector.broadcast %52 : f32 to vector<1x256xf32>
    %57 = arith.mulf %56, %50 : vector<1x256xf32>
    %58 = arith.addf %55, %57 : vector<1x256xf32>
    %c7 = arith.constant 7 : index
    %59 = memref.load %arg1[%c7] : memref<98xf32, #tpu.memory_space<smem>>
    %c56 = arith.constant 56 : index
    %60 = memref.load %arg1[%c56] : memref<98xf32, #tpu.memory_space<smem>>
    %61 = vector.broadcast %59 : f32 to vector<1x256xf32>
    %62 = arith.mulf %61, %48 : vector<1x256xf32>
    %63 = arith.addf %32, %62 : vector<1x256xf32>
    %64 = vector.broadcast %60 : f32 to vector<1x256xf32>
    %65 = arith.mulf %64, %50 : vector<1x256xf32>
    %66 = arith.addf %63, %65 : vector<1x256xf32>
    %c14 = arith.constant 14 : index
    %67 = memref.load %arg1[%c14] : memref<98xf32, #tpu.memory_space<smem>>
    %c63 = arith.constant 63 : index
    %68 = memref.load %arg1[%c63] : memref<98xf32, #tpu.memory_space<smem>>
    %69 = vector.broadcast %67 : f32 to vector<1x256xf32>
    %70 = arith.mulf %69, %48 : vector<1x256xf32>
    %71 = arith.addf %33, %70 : vector<1x256xf32>
    %72 = vector.broadcast %68 : f32 to vector<1x256xf32>
    %73 = arith.mulf %72, %50 : vector<1x256xf32>
    %74 = arith.addf %71, %73 : vector<1x256xf32>
    %c21 = arith.constant 21 : index
    %75 = memref.load %arg1[%c21] : memref<98xf32, #tpu.memory_space<smem>>
    %c70 = arith.constant 70 : index
    %76 = memref.load %arg1[%c70] : memref<98xf32, #tpu.memory_space<smem>>
    %77 = vector.broadcast %75 : f32 to vector<1x256xf32>
    %78 = arith.mulf %77, %48 : vector<1x256xf32>
    %79 = arith.addf %34, %78 : vector<1x256xf32>
    %80 = vector.broadcast %76 : f32 to vector<1x256xf32>
    %81 = arith.mulf %80, %50 : vector<1x256xf32>
    %82 = arith.addf %79, %81 : vector<1x256xf32>
    %c28 = arith.constant 28 : index
    %83 = memref.load %arg1[%c28] : memref<98xf32, #tpu.memory_space<smem>>
    %c77 = arith.constant 77 : index
    %84 = memref.load %arg1[%c77] : memref<98xf32, #tpu.memory_space<smem>>
    %85 = vector.broadcast %83 : f32 to vector<1x256xf32>
    %86 = arith.mulf %85, %48 : vector<1x256xf32>
    %87 = arith.addf %35, %86 : vector<1x256xf32>
    %88 = vector.broadcast %84 : f32 to vector<1x256xf32>
    %89 = arith.mulf %88, %50 : vector<1x256xf32>
    %90 = arith.addf %87, %89 : vector<1x256xf32>
    %c35 = arith.constant 35 : index
    %91 = memref.load %arg1[%c35] : memref<98xf32, #tpu.memory_space<smem>>
    %c84 = arith.constant 84 : index
    %92 = memref.load %arg1[%c84] : memref<98xf32, #tpu.memory_space<smem>>
    %93 = vector.broadcast %91 : f32 to vector<1x256xf32>
    %94 = arith.mulf %93, %48 : vector<1x256xf32>
    %95 = arith.addf %36, %94 : vector<1x256xf32>
    %96 = vector.broadcast %92 : f32 to vector<1x256xf32>
    %97 = arith.mulf %96, %50 : vector<1x256xf32>
    %98 = arith.addf %95, %97 : vector<1x256xf32>
    %c42 = arith.constant 42 : index
    %99 = memref.load %arg1[%c42] : memref<98xf32, #tpu.memory_space<smem>>
    %c91 = arith.constant 91 : index
    %100 = memref.load %arg1[%c91] : memref<98xf32, #tpu.memory_space<smem>>
    %101 = vector.broadcast %99 : f32 to vector<1x256xf32>
    %102 = arith.mulf %101, %48 : vector<1x256xf32>
    %103 = arith.addf %37, %102 : vector<1x256xf32>
    %104 = vector.broadcast %100 : f32 to vector<1x256xf32>
    %105 = arith.mulf %104, %50 : vector<1x256xf32>
    %106 = arith.addf %103, %105 : vector<1x256xf32>
    %c0_32 = arith.constant 0 : index
    %c0_33 = arith.constant 0 : index
    %c46 = arith.constant 46 : index
    %107 = vector.load %arg4[%c0_32, %c0_33, %c46] : memref<3x1x352xf32, #tpu.memory_space<vmem>>, vector<1x1x256xf32>
    %108 = vector.shape_cast %107 : vector<1x1x256xf32> to vector<1x256xf32>
    %c1_34 = arith.constant 1 : index
    %c0_35 = arith.constant 0 : index
    %c46_36 = arith.constant 46 : index
    %109 = vector.load %arg4[%c1_34, %c0_35, %c46_36] : memref<3x1x352xf32, #tpu.memory_space<vmem>>, vector<1x1x256xf32>
    %110 = vector.shape_cast %109 : vector<1x1x256xf32> to vector<1x256xf32>
    %c2_i32 = arith.constant 2 : i32
    %111 = vector.broadcast %c2_i32 : i32 to vector<1x256xi32>
    %112 = arith.cmpi sge, %30, %111 : vector<1x256xi32>
    %c18_i32 = arith.constant 18 : i32
    %113 = vector.broadcast %c18_i32 : i32 to vector<1x256xi32>
    %114 = arith.cmpi slt, %30, %113 : vector<1x256xi32>
    %115 = arith.andi %112, %114 : vector<1x256xi1>
    %cst_37 = arith.constant 0.000000e+00 : f32
    %116 = vector.broadcast %cst_37 : f32 to vector<1x256xf32>
    %117 = arith.select %115, %108, %116 : vector<1x256xi1>, vector<1x256xf32>
    %cst_38 = arith.constant 0.000000e+00 : f32
    %118 = vector.broadcast %cst_38 : f32 to vector<1x256xf32>
    %119 = arith.select %115, %110, %118 : vector<1x256xi1>, vector<1x256xf32>
    %c1_39 = arith.constant 1 : index
    %120 = memref.load %arg1[%c1_39] : memref<98xf32, #tpu.memory_space<smem>>
    %c50 = arith.constant 50 : index
    %121 = memref.load %arg1[%c50] : memref<98xf32, #tpu.memory_space<smem>>
    %122 = vector.broadcast %120 : f32 to vector<1x256xf32>
    %123 = arith.mulf %122, %117 : vector<1x256xf32>
    %124 = arith.addf %58, %123 : vector<1x256xf32>
    %125 = vector.broadcast %121 : f32 to vector<1x256xf32>
    %126 = arith.mulf %125, %119 : vector<1x256xf32>
    %127 = arith.addf %124, %126 : vector<1x256xf32>
    %c8 = arith.constant 8 : index
    %128 = memref.load %arg1[%c8] : memref<98xf32, #tpu.memory_space<smem>>
    %c57 = arith.constant 57 : index
    %129 = memref.load %arg1[%c57] : memref<98xf32, #tpu.memory_space<smem>>
    %130 = vector.broadcast %128 : f32 to vector<1x256xf32>
    %131 = arith.mulf %130, %117 : vector<1x256xf32>
    %132 = arith.addf %66, %131 : vector<1x256xf32>
    %133 = vector.broadcast %129 : f32 to vector<1x256xf32>
    %134 = arith.mulf %133, %119 : vector<1x256xf32>
    %135 = arith.addf %132, %134 : vector<1x256xf32>
    %c15 = arith.constant 15 : index
    %136 = memref.load %arg1[%c15] : memref<98xf32, #tpu.memory_space<smem>>
    %c64 = arith.constant 64 : index
    %137 = memref.load %arg1[%c64] : memref<98xf32, #tpu.memory_space<smem>>
    %138 = vector.broadcast %136 : f32 to vector<1x256xf32>
    %139 = arith.mulf %138, %117 : vector<1x256xf32>
    %140 = arith.addf %74, %139 : vector<1x256xf32>
    %141 = vector.broadcast %137 : f32 to vector<1x256xf32>
    %142 = arith.mulf %141, %119 : vector<1x256xf32>
    %143 = arith.addf %140, %142 : vector<1x256xf32>
    %c22 = arith.constant 22 : index
    %144 = memref.load %arg1[%c22] : memref<98xf32, #tpu.memory_space<smem>>
    %c71 = arith.constant 71 : index
    %145 = memref.load %arg1[%c71] : memref<98xf32, #tpu.memory_space<smem>>
    %146 = vector.broadcast %144 : f32 to vector<1x256xf32>
    %147 = arith.mulf %146, %117 : vector<1x256xf32>
    %148 = arith.addf %82, %147 : vector<1x256xf32>
    %149 = vector.broadcast %145 : f32 to vector<1x256xf32>
    %150 = arith.mulf %149, %119 : vector<1x256xf32>
    %151 = arith.addf %148, %150 : vector<1x256xf32>
    %c29 = arith.constant 29 : index
    %152 = memref.load %arg1[%c29] : memref<98xf32, #tpu.memory_space<smem>>
    %c78 = arith.constant 78 : index
    %153 = memref.load %arg1[%c78] : memref<98xf32, #tpu.memory_space<smem>>
    %154 = vector.broadcast %152 : f32 to vector<1x256xf32>
    %155 = arith.mulf %154, %117 : vector<1x256xf32>
    %156 = arith.addf %90, %155 : vector<1x256xf32>
    %157 = vector.broadcast %153 : f32 to vector<1x256xf32>
    %158 = arith.mulf %157, %119 : vector<1x256xf32>
    %159 = arith.addf %156, %158 : vector<1x256xf32>
    %c36 = arith.constant 36 : index
    %160 = memref.load %arg1[%c36] : memref<98xf32, #tpu.memory_space<smem>>
    %c85 = arith.constant 85 : index
    %161 = memref.load %arg1[%c85] : memref<98xf32, #tpu.memory_space<smem>>
    %162 = vector.broadcast %160 : f32 to vector<1x256xf32>
    %163 = arith.mulf %162, %117 : vector<1x256xf32>
    %164 = arith.addf %98, %163 : vector<1x256xf32>
    %165 = vector.broadcast %161 : f32 to vector<1x256xf32>
    %166 = arith.mulf %165, %119 : vector<1x256xf32>
    %167 = arith.addf %164, %166 : vector<1x256xf32>
    %c43 = arith.constant 43 : index
    %168 = memref.load %arg1[%c43] : memref<98xf32, #tpu.memory_space<smem>>
    %c92 = arith.constant 92 : index
    %169 = memref.load %arg1[%c92] : memref<98xf32, #tpu.memory_space<smem>>
    %170 = vector.broadcast %168 : f32 to vector<1x256xf32>
    %171 = arith.mulf %170, %117 : vector<1x256xf32>
    %172 = arith.addf %106, %171 : vector<1x256xf32>
    %173 = vector.broadcast %169 : f32 to vector<1x256xf32>
    %174 = arith.mulf %173, %119 : vector<1x256xf32>
    %175 = arith.addf %172, %174 : vector<1x256xf32>
    %c0_40 = arith.constant 0 : index
    %c0_41 = arith.constant 0 : index
    %c47 = arith.constant 47 : index
    %176 = vector.load %arg4[%c0_40, %c0_41, %c47] : memref<3x1x352xf32, #tpu.memory_space<vmem>>, vector<1x1x256xf32>
    %177 = vector.shape_cast %176 : vector<1x1x256xf32> to vector<1x256xf32>
    %c1_42 = arith.constant 1 : index
    %c0_43 = arith.constant 0 : index
    %c47_44 = arith.constant 47 : index
    %178 = vector.load %arg4[%c1_42, %c0_43, %c47_44] : memref<3x1x352xf32, #tpu.memory_space<vmem>>, vector<1x1x256xf32>
    %179 = vector.shape_cast %178 : vector<1x1x256xf32> to vector<1x256xf32>
    %c1_i32_45 = arith.constant 1 : i32
    %180 = vector.broadcast %c1_i32_45 : i32 to vector<1x256xi32>
    %181 = arith.cmpi sge, %30, %180 : vector<1x256xi32>
    %c17_i32 = arith.constant 17 : i32
    %182 = vector.broadcast %c17_i32 : i32 to vector<1x256xi32>
    %183 = arith.cmpi slt, %30, %182 : vector<1x256xi32>
    %184 = arith.andi %181, %183 : vector<1x256xi1>
    %cst_46 = arith.constant 0.000000e+00 : f32
    %185 = vector.broadcast %cst_46 : f32 to vector<1x256xf32>
    %186 = arith.select %184, %177, %185 : vector<1x256xi1>, vector<1x256xf32>
    %cst_47 = arith.constant 0.000000e+00 : f32
    %187 = vector.broadcast %cst_47 : f32 to vector<1x256xf32>
    %188 = arith.select %184, %179, %187 : vector<1x256xi1>, vector<1x256xf32>
    %c2 = arith.constant 2 : index
    %189 = memref.load %arg1[%c2] : memref<98xf32, #tpu.memory_space<smem>>
    %c51 = arith.constant 51 : index
    %190 = memref.load %arg1[%c51] : memref<98xf32, #tpu.memory_space<smem>>
    %191 = vector.broadcast %189 : f32 to vector<1x256xf32>
    %192 = arith.mulf %191, %186 : vector<1x256xf32>
    %193 = arith.addf %127, %192 : vector<1x256xf32>
    %194 = vector.broadcast %190 : f32 to vector<1x256xf32>
    %195 = arith.mulf %194, %188 : vector<1x256xf32>
    %196 = arith.addf %193, %195 : vector<1x256xf32>
    %c9 = arith.constant 9 : index
    %197 = memref.load %arg1[%c9] : memref<98xf32, #tpu.memory_space<smem>>
    %c58 = arith.constant 58 : index
    %198 = memref.load %arg1[%c58] : memref<98xf32, #tpu.memory_space<smem>>
    %199 = vector.broadcast %197 : f32 to vector<1x256xf32>
    %200 = arith.mulf %199, %186 : vector<1x256xf32>
    %201 = arith.addf %135, %200 : vector<1x256xf32>
    %202 = vector.broadcast %198 : f32 to vector<1x256xf32>
    %203 = arith.mulf %202, %188 : vector<1x256xf32>
    %204 = arith.addf %201, %203 : vector<1x256xf32>
    %c16 = arith.constant 16 : index
    %205 = memref.load %arg1[%c16] : memref<98xf32, #tpu.memory_space<smem>>
    %c65 = arith.constant 65 : index
    %206 = memref.load %arg1[%c65] : memref<98xf32, #tpu.memory_space<smem>>
    %207 = vector.broadcast %205 : f32 to vector<1x256xf32>
    %208 = arith.mulf %207, %186 : vector<1x256xf32>
    %209 = arith.addf %143, %208 : vector<1x256xf32>
    %210 = vector.broadcast %206 : f32 to vector<1x256xf32>
    %211 = arith.mulf %210, %188 : vector<1x256xf32>
    %212 = arith.addf %209, %211 : vector<1x256xf32>
    %c23 = arith.constant 23 : index
    %213 = memref.load %arg1[%c23] : memref<98xf32, #tpu.memory_space<smem>>
    %c72 = arith.constant 72 : index
    %214 = memref.load %arg1[%c72] : memref<98xf32, #tpu.memory_space<smem>>
    %215 = vector.broadcast %213 : f32 to vector<1x256xf32>
    %216 = arith.mulf %215, %186 : vector<1x256xf32>
    %217 = arith.addf %151, %216 : vector<1x256xf32>
    %218 = vector.broadcast %214 : f32 to vector<1x256xf32>
    %219 = arith.mulf %218, %188 : vector<1x256xf32>
    %220 = arith.addf %217, %219 : vector<1x256xf32>
    %c30 = arith.constant 30 : index
    %221 = memref.load %arg1[%c30] : memref<98xf32, #tpu.memory_space<smem>>
    %c79 = arith.constant 79 : index
    %222 = memref.load %arg1[%c79] : memref<98xf32, #tpu.memory_space<smem>>
    %223 = vector.broadcast %221 : f32 to vector<1x256xf32>
    %224 = arith.mulf %223, %186 : vector<1x256xf32>
    %225 = arith.addf %159, %224 : vector<1x256xf32>
    %226 = vector.broadcast %222 : f32 to vector<1x256xf32>
    %227 = arith.mulf %226, %188 : vector<1x256xf32>
    %228 = arith.addf %225, %227 : vector<1x256xf32>
    %c37 = arith.constant 37 : index
    %229 = memref.load %arg1[%c37] : memref<98xf32, #tpu.memory_space<smem>>
    %c86 = arith.constant 86 : index
    %230 = memref.load %arg1[%c86] : memref<98xf32, #tpu.memory_space<smem>>
    %231 = vector.broadcast %229 : f32 to vector<1x256xf32>
    %232 = arith.mulf %231, %186 : vector<1x256xf32>
    %233 = arith.addf %167, %232 : vector<1x256xf32>
    %234 = vector.broadcast %230 : f32 to vector<1x256xf32>
    %235 = arith.mulf %234, %188 : vector<1x256xf32>
    %236 = arith.addf %233, %235 : vector<1x256xf32>
    %c44 = arith.constant 44 : index
    %237 = memref.load %arg1[%c44] : memref<98xf32, #tpu.memory_space<smem>>
    %c93 = arith.constant 93 : index
    %238 = memref.load %arg1[%c93] : memref<98xf32, #tpu.memory_space<smem>>
    %239 = vector.broadcast %237 : f32 to vector<1x256xf32>
    %240 = arith.mulf %239, %186 : vector<1x256xf32>
    %241 = arith.addf %175, %240 : vector<1x256xf32>
    %242 = vector.broadcast %238 : f32 to vector<1x256xf32>
    %243 = arith.mulf %242, %188 : vector<1x256xf32>
    %244 = arith.addf %241, %243 : vector<1x256xf32>
    %c0_48 = arith.constant 0 : index
    %c0_49 = arith.constant 0 : index
    %c48_50 = arith.constant 48 : index
    %245 = vector.load %arg4[%c0_48, %c0_49, %c48_50] : memref<3x1x352xf32, #tpu.memory_space<vmem>>, vector<1x1x256xf32>
    %246 = vector.shape_cast %245 : vector<1x1x256xf32> to vector<1x256xf32>
    %c1_51 = arith.constant 1 : index
    %c0_52 = arith.constant 0 : index
    %c48_53 = arith.constant 48 : index
    %247 = vector.load %arg4[%c1_51, %c0_52, %c48_53] : memref<3x1x352xf32, #tpu.memory_space<vmem>>, vector<1x1x256xf32>
    %248 = vector.shape_cast %247 : vector<1x1x256xf32> to vector<1x256xf32>
    %c3 = arith.constant 3 : index
    %249 = memref.load %arg1[%c3] : memref<98xf32, #tpu.memory_space<smem>>
    %c52 = arith.constant 52 : index
    %250 = memref.load %arg1[%c52] : memref<98xf32, #tpu.memory_space<smem>>
    %251 = vector.broadcast %249 : f32 to vector<1x256xf32>
    %252 = arith.mulf %251, %246 : vector<1x256xf32>
    %253 = arith.addf %196, %252 : vector<1x256xf32>
    %254 = vector.broadcast %250 : f32 to vector<1x256xf32>
    %255 = arith.mulf %254, %248 : vector<1x256xf32>
    %256 = arith.addf %253, %255 : vector<1x256xf32>
    %c10 = arith.constant 10 : index
    %257 = memref.load %arg1[%c10] : memref<98xf32, #tpu.memory_space<smem>>
    %c59 = arith.constant 59 : index
    %258 = memref.load %arg1[%c59] : memref<98xf32, #tpu.memory_space<smem>>
    %259 = vector.broadcast %257 : f32 to vector<1x256xf32>
    %260 = arith.mulf %259, %246 : vector<1x256xf32>
    %261 = arith.addf %204, %260 : vector<1x256xf32>
    %262 = vector.broadcast %258 : f32 to vector<1x256xf32>
    %263 = arith.mulf %262, %248 : vector<1x256xf32>
    %264 = arith.addf %261, %263 : vector<1x256xf32>
    %c17 = arith.constant 17 : index
    %265 = memref.load %arg1[%c17] : memref<98xf32, #tpu.memory_space<smem>>
    %c66 = arith.constant 66 : index
    %266 = memref.load %arg1[%c66] : memref<98xf32, #tpu.memory_space<smem>>
    %267 = vector.broadcast %265 : f32 to vector<1x256xf32>
    %268 = arith.mulf %267, %246 : vector<1x256xf32>
    %269 = arith.addf %212, %268 : vector<1x256xf32>
    %270 = vector.broadcast %266 : f32 to vector<1x256xf32>
    %271 = arith.mulf %270, %248 : vector<1x256xf32>
    %272 = arith.addf %269, %271 : vector<1x256xf32>
    %c24 = arith.constant 24 : index
    %273 = memref.load %arg1[%c24] : memref<98xf32, #tpu.memory_space<smem>>
    %c73 = arith.constant 73 : index
    %274 = memref.load %arg1[%c73] : memref<98xf32, #tpu.memory_space<smem>>
    %275 = vector.broadcast %273 : f32 to vector<1x256xf32>
    %276 = arith.mulf %275, %246 : vector<1x256xf32>
    %277 = arith.addf %220, %276 : vector<1x256xf32>
    %278 = vector.broadcast %274 : f32 to vector<1x256xf32>
    %279 = arith.mulf %278, %248 : vector<1x256xf32>
    %280 = arith.addf %277, %279 : vector<1x256xf32>
    %c31 = arith.constant 31 : index
    %281 = memref.load %arg1[%c31] : memref<98xf32, #tpu.memory_space<smem>>
    %c80 = arith.constant 80 : index
    %282 = memref.load %arg1[%c80] : memref<98xf32, #tpu.memory_space<smem>>
    %283 = vector.broadcast %281 : f32 to vector<1x256xf32>
    %284 = arith.mulf %283, %246 : vector<1x256xf32>
    %285 = arith.addf %228, %284 : vector<1x256xf32>
    %286 = vector.broadcast %282 : f32 to vector<1x256xf32>
    %287 = arith.mulf %286, %248 : vector<1x256xf32>
    %288 = arith.addf %285, %287 : vector<1x256xf32>
    %c38 = arith.constant 38 : index
    %289 = memref.load %arg1[%c38] : memref<98xf32, #tpu.memory_space<smem>>
    %c87 = arith.constant 87 : index
    %290 = memref.load %arg1[%c87] : memref<98xf32, #tpu.memory_space<smem>>
    %291 = vector.broadcast %289 : f32 to vector<1x256xf32>
    %292 = arith.mulf %291, %246 : vector<1x256xf32>
    %293 = arith.addf %236, %292 : vector<1x256xf32>
    %294 = vector.broadcast %290 : f32 to vector<1x256xf32>
    %295 = arith.mulf %294, %248 : vector<1x256xf32>
    %296 = arith.addf %293, %295 : vector<1x256xf32>
    %c45_54 = arith.constant 45 : index
    %297 = memref.load %arg1[%c45_54] : memref<98xf32, #tpu.memory_space<smem>>
    %c94 = arith.constant 94 : index
    %298 = memref.load %arg1[%c94] : memref<98xf32, #tpu.memory_space<smem>>
    %299 = vector.broadcast %297 : f32 to vector<1x256xf32>
    %300 = arith.mulf %299, %246 : vector<1x256xf32>
    %301 = arith.addf %244, %300 : vector<1x256xf32>
    %302 = vector.broadcast %298 : f32 to vector<1x256xf32>
    %303 = arith.mulf %302, %248 : vector<1x256xf32>
    %304 = arith.addf %301, %303 : vector<1x256xf32>
    %c0_55 = arith.constant 0 : index
    %c0_56 = arith.constant 0 : index
    %c49_57 = arith.constant 49 : index
    %305 = vector.load %arg4[%c0_55, %c0_56, %c49_57] : memref<3x1x352xf32, #tpu.memory_space<vmem>>, vector<1x1x256xf32>
    %306 = vector.shape_cast %305 : vector<1x1x256xf32> to vector<1x256xf32>
    %c1_58 = arith.constant 1 : index
    %c0_59 = arith.constant 0 : index
    %c49_60 = arith.constant 49 : index
    %307 = vector.load %arg4[%c1_58, %c0_59, %c49_60] : memref<3x1x352xf32, #tpu.memory_space<vmem>>, vector<1x1x256xf32>
    %308 = vector.shape_cast %307 : vector<1x1x256xf32> to vector<1x256xf32>
    %c-1_i32 = arith.constant -1 : i32
    %309 = vector.broadcast %c-1_i32 : i32 to vector<1x256xi32>
    %310 = arith.cmpi sge, %30, %309 : vector<1x256xi32>
    %c15_i32 = arith.constant 15 : i32
    %311 = vector.broadcast %c15_i32 : i32 to vector<1x256xi32>
    %312 = arith.cmpi slt, %30, %311 : vector<1x256xi32>
    %313 = arith.andi %310, %312 : vector<1x256xi1>
    %cst_61 = arith.constant 0.000000e+00 : f32
    %314 = vector.broadcast %cst_61 : f32 to vector<1x256xf32>
    %315 = arith.select %313, %306, %314 : vector<1x256xi1>, vector<1x256xf32>
    %cst_62 = arith.constant 0.000000e+00 : f32
    %316 = vector.broadcast %cst_62 : f32 to vector<1x256xf32>
    %317 = arith.select %313, %308, %316 : vector<1x256xi1>, vector<1x256xf32>
    %c4 = arith.constant 4 : index
    %318 = memref.load %arg1[%c4] : memref<98xf32, #tpu.memory_space<smem>>
    %c53 = arith.constant 53 : index
    %319 = memref.load %arg1[%c53] : memref<98xf32, #tpu.memory_space<smem>>
    %320 = vector.broadcast %318 : f32 to vector<1x256xf32>
    %321 = arith.mulf %320, %315 : vector<1x256xf32>
    %322 = arith.addf %256, %321 : vector<1x256xf32>
    %323 = vector.broadcast %319 : f32 to vector<1x256xf32>
    %324 = arith.mulf %323, %317 : vector<1x256xf32>
    %325 = arith.addf %322, %324 : vector<1x256xf32>
    %c11 = arith.constant 11 : index
    %326 = memref.load %arg1[%c11] : memref<98xf32, #tpu.memory_space<smem>>
    %c60 = arith.constant 60 : index
    %327 = memref.load %arg1[%c60] : memref<98xf32, #tpu.memory_space<smem>>
    %328 = vector.broadcast %326 : f32 to vector<1x256xf32>
    %329 = arith.mulf %328, %315 : vector<1x256xf32>
    %330 = arith.addf %264, %329 : vector<1x256xf32>
    %331 = vector.broadcast %327 : f32 to vector<1x256xf32>
    %332 = arith.mulf %331, %317 : vector<1x256xf32>
    %333 = arith.addf %330, %332 : vector<1x256xf32>
    %c18 = arith.constant 18 : index
    %334 = memref.load %arg1[%c18] : memref<98xf32, #tpu.memory_space<smem>>
    %c67 = arith.constant 67 : index
    %335 = memref.load %arg1[%c67] : memref<98xf32, #tpu.memory_space<smem>>
    %336 = vector.broadcast %334 : f32 to vector<1x256xf32>
    %337 = arith.mulf %336, %315 : vector<1x256xf32>
    %338 = arith.addf %272, %337 : vector<1x256xf32>
    %339 = vector.broadcast %335 : f32 to vector<1x256xf32>
    %340 = arith.mulf %339, %317 : vector<1x256xf32>
    %341 = arith.addf %338, %340 : vector<1x256xf32>
    %c25 = arith.constant 25 : index
    %342 = memref.load %arg1[%c25] : memref<98xf32, #tpu.memory_space<smem>>
    %c74 = arith.constant 74 : index
    %343 = memref.load %arg1[%c74] : memref<98xf32, #tpu.memory_space<smem>>
    %344 = vector.broadcast %342 : f32 to vector<1x256xf32>
    %345 = arith.mulf %344, %315 : vector<1x256xf32>
    %346 = arith.addf %280, %345 : vector<1x256xf32>
    %347 = vector.broadcast %343 : f32 to vector<1x256xf32>
    %348 = arith.mulf %347, %317 : vector<1x256xf32>
    %349 = arith.addf %346, %348 : vector<1x256xf32>
    %c32 = arith.constant 32 : index
    %350 = memref.load %arg1[%c32] : memref<98xf32, #tpu.memory_space<smem>>
    %c81 = arith.constant 81 : index
    %351 = memref.load %arg1[%c81] : memref<98xf32, #tpu.memory_space<smem>>
    %352 = vector.broadcast %350 : f32 to vector<1x256xf32>
    %353 = arith.mulf %352, %315 : vector<1x256xf32>
    %354 = arith.addf %288, %353 : vector<1x256xf32>
    %355 = vector.broadcast %351 : f32 to vector<1x256xf32>
    %356 = arith.mulf %355, %317 : vector<1x256xf32>
    %357 = arith.addf %354, %356 : vector<1x256xf32>
    %c39 = arith.constant 39 : index
    %358 = memref.load %arg1[%c39] : memref<98xf32, #tpu.memory_space<smem>>
    %c88 = arith.constant 88 : index
    %359 = memref.load %arg1[%c88] : memref<98xf32, #tpu.memory_space<smem>>
    %360 = vector.broadcast %358 : f32 to vector<1x256xf32>
    %361 = arith.mulf %360, %315 : vector<1x256xf32>
    %362 = arith.addf %296, %361 : vector<1x256xf32>
    %363 = vector.broadcast %359 : f32 to vector<1x256xf32>
    %364 = arith.mulf %363, %317 : vector<1x256xf32>
    %365 = arith.addf %362, %364 : vector<1x256xf32>
    %c46_63 = arith.constant 46 : index
    %366 = memref.load %arg1[%c46_63] : memref<98xf32, #tpu.memory_space<smem>>
    %c95 = arith.constant 95 : index
    %367 = memref.load %arg1[%c95] : memref<98xf32, #tpu.memory_space<smem>>
    %368 = vector.broadcast %366 : f32 to vector<1x256xf32>
    %369 = arith.mulf %368, %315 : vector<1x256xf32>
    %370 = arith.addf %304, %369 : vector<1x256xf32>
    %371 = vector.broadcast %367 : f32 to vector<1x256xf32>
    %372 = arith.mulf %371, %317 : vector<1x256xf32>
    %373 = arith.addf %370, %372 : vector<1x256xf32>
    %c0_64 = arith.constant 0 : index
    %c0_65 = arith.constant 0 : index
    %c50_66 = arith.constant 50 : index
    %374 = vector.load %arg4[%c0_64, %c0_65, %c50_66] : memref<3x1x352xf32, #tpu.memory_space<vmem>>, vector<1x1x256xf32>
    %375 = vector.shape_cast %374 : vector<1x1x256xf32> to vector<1x256xf32>
    %c1_67 = arith.constant 1 : index
    %c0_68 = arith.constant 0 : index
    %c50_69 = arith.constant 50 : index
    %376 = vector.load %arg4[%c1_67, %c0_68, %c50_69] : memref<3x1x352xf32, #tpu.memory_space<vmem>>, vector<1x1x256xf32>
    %377 = vector.shape_cast %376 : vector<1x1x256xf32> to vector<1x256xf32>
    %c-2_i32 = arith.constant -2 : i32
    %378 = vector.broadcast %c-2_i32 : i32 to vector<1x256xi32>
    %379 = arith.cmpi sge, %30, %378 : vector<1x256xi32>
    %c14_i32 = arith.constant 14 : i32
    %380 = vector.broadcast %c14_i32 : i32 to vector<1x256xi32>
    %381 = arith.cmpi slt, %30, %380 : vector<1x256xi32>
    %382 = arith.andi %379, %381 : vector<1x256xi1>
    %cst_70 = arith.constant 0.000000e+00 : f32
    %383 = vector.broadcast %cst_70 : f32 to vector<1x256xf32>
    %384 = arith.select %382, %375, %383 : vector<1x256xi1>, vector<1x256xf32>
    %cst_71 = arith.constant 0.000000e+00 : f32
    %385 = vector.broadcast %cst_71 : f32 to vector<1x256xf32>
    %386 = arith.select %382, %377, %385 : vector<1x256xi1>, vector<1x256xf32>
    %c5 = arith.constant 5 : index
    %387 = memref.load %arg1[%c5] : memref<98xf32, #tpu.memory_space<smem>>
    %c54 = arith.constant 54 : index
    %388 = memref.load %arg1[%c54] : memref<98xf32, #tpu.memory_space<smem>>
    %389 = vector.broadcast %387 : f32 to vector<1x256xf32>
    %390 = arith.mulf %389, %384 : vector<1x256xf32>
    %391 = arith.addf %325, %390 : vector<1x256xf32>
    %392 = vector.broadcast %388 : f32 to vector<1x256xf32>
    %393 = arith.mulf %392, %386 : vector<1x256xf32>
    %394 = arith.addf %391, %393 : vector<1x256xf32>
    %c12 = arith.constant 12 : index
    %395 = memref.load %arg1[%c12] : memref<98xf32, #tpu.memory_space<smem>>
    %c61 = arith.constant 61 : index
    %396 = memref.load %arg1[%c61] : memref<98xf32, #tpu.memory_space<smem>>
    %397 = vector.broadcast %395 : f32 to vector<1x256xf32>
    %398 = arith.mulf %397, %384 : vector<1x256xf32>
    %399 = arith.addf %333, %398 : vector<1x256xf32>
    %400 = vector.broadcast %396 : f32 to vector<1x256xf32>
    %401 = arith.mulf %400, %386 : vector<1x256xf32>
    %402 = arith.addf %399, %401 : vector<1x256xf32>
    %c19 = arith.constant 19 : index
    %403 = memref.load %arg1[%c19] : memref<98xf32, #tpu.memory_space<smem>>
    %c68 = arith.constant 68 : index
    %404 = memref.load %arg1[%c68] : memref<98xf32, #tpu.memory_space<smem>>
    %405 = vector.broadcast %403 : f32 to vector<1x256xf32>
    %406 = arith.mulf %405, %384 : vector<1x256xf32>
    %407 = arith.addf %341, %406 : vector<1x256xf32>
    %408 = vector.broadcast %404 : f32 to vector<1x256xf32>
    %409 = arith.mulf %408, %386 : vector<1x256xf32>
    %410 = arith.addf %407, %409 : vector<1x256xf32>
    %c26 = arith.constant 26 : index
    %411 = memref.load %arg1[%c26] : memref<98xf32, #tpu.memory_space<smem>>
    %c75 = arith.constant 75 : index
    %412 = memref.load %arg1[%c75] : memref<98xf32, #tpu.memory_space<smem>>
    %413 = vector.broadcast %411 : f32 to vector<1x256xf32>
    %414 = arith.mulf %413, %384 : vector<1x256xf32>
    %415 = arith.addf %349, %414 : vector<1x256xf32>
    %416 = vector.broadcast %412 : f32 to vector<1x256xf32>
    %417 = arith.mulf %416, %386 : vector<1x256xf32>
    %418 = arith.addf %415, %417 : vector<1x256xf32>
    %c33 = arith.constant 33 : index
    %419 = memref.load %arg1[%c33] : memref<98xf32, #tpu.memory_space<smem>>
    %c82 = arith.constant 82 : index
    %420 = memref.load %arg1[%c82] : memref<98xf32, #tpu.memory_space<smem>>
    %421 = vector.broadcast %419 : f32 to vector<1x256xf32>
    %422 = arith.mulf %421, %384 : vector<1x256xf32>
    %423 = arith.addf %357, %422 : vector<1x256xf32>
    %424 = vector.broadcast %420 : f32 to vector<1x256xf32>
    %425 = arith.mulf %424, %386 : vector<1x256xf32>
    %426 = arith.addf %423, %425 : vector<1x256xf32>
    %c40 = arith.constant 40 : index
    %427 = memref.load %arg1[%c40] : memref<98xf32, #tpu.memory_space<smem>>
    %c89 = arith.constant 89 : index
    %428 = memref.load %arg1[%c89] : memref<98xf32, #tpu.memory_space<smem>>
    %429 = vector.broadcast %427 : f32 to vector<1x256xf32>
    %430 = arith.mulf %429, %384 : vector<1x256xf32>
    %431 = arith.addf %365, %430 : vector<1x256xf32>
    %432 = vector.broadcast %428 : f32 to vector<1x256xf32>
    %433 = arith.mulf %432, %386 : vector<1x256xf32>
    %434 = arith.addf %431, %433 : vector<1x256xf32>
    %c47_72 = arith.constant 47 : index
    %435 = memref.load %arg1[%c47_72] : memref<98xf32, #tpu.memory_space<smem>>
    %c96 = arith.constant 96 : index
    %436 = memref.load %arg1[%c96] : memref<98xf32, #tpu.memory_space<smem>>
    %437 = vector.broadcast %435 : f32 to vector<1x256xf32>
    %438 = arith.mulf %437, %384 : vector<1x256xf32>
    %439 = arith.addf %373, %438 : vector<1x256xf32>
    %440 = vector.broadcast %436 : f32 to vector<1x256xf32>
    %441 = arith.mulf %440, %386 : vector<1x256xf32>
    %442 = arith.addf %439, %441 : vector<1x256xf32>
    %c0_73 = arith.constant 0 : index
    %c0_74 = arith.constant 0 : index
    %c51_75 = arith.constant 51 : index
    %443 = vector.load %arg4[%c0_73, %c0_74, %c51_75] : memref<3x1x352xf32, #tpu.memory_space<vmem>>, vector<1x1x256xf32>
    %444 = vector.shape_cast %443 : vector<1x1x256xf32> to vector<1x256xf32>
    %c1_76 = arith.constant 1 : index
    %c0_77 = arith.constant 0 : index
    %c51_78 = arith.constant 51 : index
    %445 = vector.load %arg4[%c1_76, %c0_77, %c51_78] : memref<3x1x352xf32, #tpu.memory_space<vmem>>, vector<1x1x256xf32>
    %446 = vector.shape_cast %445 : vector<1x1x256xf32> to vector<1x256xf32>
    %c-3_i32 = arith.constant -3 : i32
    %447 = vector.broadcast %c-3_i32 : i32 to vector<1x256xi32>
    %448 = arith.cmpi sge, %30, %447 : vector<1x256xi32>
    %c13_i32 = arith.constant 13 : i32
    %449 = vector.broadcast %c13_i32 : i32 to vector<1x256xi32>
    %450 = arith.cmpi slt, %30, %449 : vector<1x256xi32>
    %451 = arith.andi %448, %450 : vector<1x256xi1>
    %cst_79 = arith.constant 0.000000e+00 : f32
    %452 = vector.broadcast %cst_79 : f32 to vector<1x256xf32>
    %453 = arith.select %451, %444, %452 : vector<1x256xi1>, vector<1x256xf32>
    %cst_80 = arith.constant 0.000000e+00 : f32
    %454 = vector.broadcast %cst_80 : f32 to vector<1x256xf32>
    %455 = arith.select %451, %446, %454 : vector<1x256xi1>, vector<1x256xf32>
    %c6 = arith.constant 6 : index
    %456 = memref.load %arg1[%c6] : memref<98xf32, #tpu.memory_space<smem>>
    %c55 = arith.constant 55 : index
    %457 = memref.load %arg1[%c55] : memref<98xf32, #tpu.memory_space<smem>>
    %458 = vector.broadcast %456 : f32 to vector<1x256xf32>
    %459 = arith.mulf %458, %453 : vector<1x256xf32>
    %460 = arith.addf %394, %459 : vector<1x256xf32>
    %461 = vector.broadcast %457 : f32 to vector<1x256xf32>
    %462 = arith.mulf %461, %455 : vector<1x256xf32>
    %463 = arith.addf %460, %462 : vector<1x256xf32>
    %c13 = arith.constant 13 : index
    %464 = memref.load %arg1[%c13] : memref<98xf32, #tpu.memory_space<smem>>
    %c62 = arith.constant 62 : index
    %465 = memref.load %arg1[%c62] : memref<98xf32, #tpu.memory_space<smem>>
    %466 = vector.broadcast %464 : f32 to vector<1x256xf32>
    %467 = arith.mulf %466, %453 : vector<1x256xf32>
    %468 = arith.addf %402, %467 : vector<1x256xf32>
    %469 = vector.broadcast %465 : f32 to vector<1x256xf32>
    %470 = arith.mulf %469, %455 : vector<1x256xf32>
    %471 = arith.addf %468, %470 : vector<1x256xf32>
    %c20 = arith.constant 20 : index
    %472 = memref.load %arg1[%c20] : memref<98xf32, #tpu.memory_space<smem>>
    %c69 = arith.constant 69 : index
    %473 = memref.load %arg1[%c69] : memref<98xf32, #tpu.memory_space<smem>>
    %474 = vector.broadcast %472 : f32 to vector<1x256xf32>
    %475 = arith.mulf %474, %453 : vector<1x256xf32>
    %476 = arith.addf %410, %475 : vector<1x256xf32>
    %477 = vector.broadcast %473 : f32 to vector<1x256xf32>
    %478 = arith.mulf %477, %455 : vector<1x256xf32>
    %479 = arith.addf %476, %478 : vector<1x256xf32>
    %c27 = arith.constant 27 : index
    %480 = memref.load %arg1[%c27] : memref<98xf32, #tpu.memory_space<smem>>
    %c76 = arith.constant 76 : index
    %481 = memref.load %arg1[%c76] : memref<98xf32, #tpu.memory_space<smem>>
    %482 = vector.broadcast %480 : f32 to vector<1x256xf32>
    %483 = arith.mulf %482, %453 : vector<1x256xf32>
    %484 = arith.addf %418, %483 : vector<1x256xf32>
    %485 = vector.broadcast %481 : f32 to vector<1x256xf32>
    %486 = arith.mulf %485, %455 : vector<1x256xf32>
    %487 = arith.addf %484, %486 : vector<1x256xf32>
    %c34 = arith.constant 34 : index
    %488 = memref.load %arg1[%c34] : memref<98xf32, #tpu.memory_space<smem>>
    %c83 = arith.constant 83 : index
    %489 = memref.load %arg1[%c83] : memref<98xf32, #tpu.memory_space<smem>>
    %490 = vector.broadcast %488 : f32 to vector<1x256xf32>
    %491 = arith.mulf %490, %453 : vector<1x256xf32>
    %492 = arith.addf %426, %491 : vector<1x256xf32>
    %493 = vector.broadcast %489 : f32 to vector<1x256xf32>
    %494 = arith.mulf %493, %455 : vector<1x256xf32>
    %495 = arith.addf %492, %494 : vector<1x256xf32>
    %c41 = arith.constant 41 : index
    %496 = memref.load %arg1[%c41] : memref<98xf32, #tpu.memory_space<smem>>
    %c90 = arith.constant 90 : index
    %497 = memref.load %arg1[%c90] : memref<98xf32, #tpu.memory_space<smem>>
    %498 = vector.broadcast %496 : f32 to vector<1x256xf32>
    %499 = arith.mulf %498, %453 : vector<1x256xf32>
    %500 = arith.addf %434, %499 : vector<1x256xf32>
    %501 = vector.broadcast %497 : f32 to vector<1x256xf32>
    %502 = arith.mulf %501, %455 : vector<1x256xf32>
    %503 = arith.addf %500, %502 : vector<1x256xf32>
    %c48_81 = arith.constant 48 : index
    %504 = memref.load %arg1[%c48_81] : memref<98xf32, #tpu.memory_space<smem>>
    %c97 = arith.constant 97 : index
    %505 = memref.load %arg1[%c97] : memref<98xf32, #tpu.memory_space<smem>>
    %506 = vector.broadcast %504 : f32 to vector<1x256xf32>
    %507 = arith.mulf %506, %453 : vector<1x256xf32>
    %508 = arith.addf %442, %507 : vector<1x256xf32>
    %509 = vector.broadcast %505 : f32 to vector<1x256xf32>
    %510 = arith.mulf %509, %455 : vector<1x256xf32>
    %511 = arith.addf %508, %510 : vector<1x256xf32>
    %cst_82 = arith.constant 0.000000e+00 : f32
    %512 = vector.broadcast %cst_82 : f32 to vector<1x256xf32>
    %c2_83 = arith.constant 2 : index
    %c0_84 = arith.constant 0 : index
    %c48_85 = arith.constant 48 : index
    %513 = vector.load %arg4[%c2_83, %c0_84, %c48_85] : memref<3x1x352xf32, #tpu.memory_space<vmem>>, vector<1x1x256xf32>
    %514 = vector.shape_cast %513 : vector<1x1x256xf32> to vector<1x256xf32>
    %515 = vector.shape_cast %463 : vector<1x256xf32> to vector<1x1x256xf32>
    tpu.vector_store %arg4[%c2_83, %c0_84, %c48_85], %515 {strides = array<i32>} : memref<3x1x352xf32, #tpu.memory_space<vmem>>, vector<1x1x256xf32>,
    %c2_86 = arith.constant 2 : index
    %c0_87 = arith.constant 0 : index
    %c0_88 = arith.constant 0 : index
    %516 = vector.load %arg4[%c2_86, %c0_87, %c0_88] : memref<3x1x352xf32, #tpu.memory_space<vmem>>, vector<1x1x256xf32>
    %517 = vector.shape_cast %516 : vector<1x1x256xf32> to vector<1x256xf32>
    %518 = arith.addf %512, %517 : vector<1x256xf32>
    %c2_89 = arith.constant 2 : index
    %c0_90 = arith.constant 0 : index
    %c48_91 = arith.constant 48 : index
    %519 = vector.load %arg4[%c2_89, %c0_90, %c48_91] : memref<3x1x352xf32, #tpu.memory_space<vmem>>, vector<1x1x256xf32>
    %520 = vector.shape_cast %519 : vector<1x1x256xf32> to vector<1x256xf32>
    %521 = vector.shape_cast %471 : vector<1x256xf32> to vector<1x1x256xf32>
    tpu.vector_store %arg4[%c2_89, %c0_90, %c48_91], %521 {strides = array<i32>} : memref<3x1x352xf32, #tpu.memory_space<vmem>>, vector<1x1x256xf32>,
    %c2_92 = arith.constant 2 : index
    %c0_93 = arith.constant 0 : index
    %c16_94 = arith.constant 16 : index
    %522 = vector.load %arg4[%c2_92, %c0_93, %c16_94] : memref<3x1x352xf32, #tpu.memory_space<vmem>>, vector<1x1x256xf32>
    %523 = vector.shape_cast %522 : vector<1x1x256xf32> to vector<1x256xf32>
    %524 = arith.addf %518, %523 : vector<1x256xf32>
    %c2_95 = arith.constant 2 : index
    %c0_96 = arith.constant 0 : index
    %c48_97 = arith.constant 48 : index
    %525 = vector.load %arg4[%c2_95, %c0_96, %c48_97] : memref<3x1x352xf32, #tpu.memory_space<vmem>>, vector<1x1x256xf32>
    %526 = vector.shape_cast %525 : vector<1x1x256xf32> to vector<1x256xf32>
    %527 = vector.shape_cast %479 : vector<1x256xf32> to vector<1x1x256xf32>
    tpu.vector_store %arg4[%c2_95, %c0_96, %c48_97], %527 {strides = array<i32>} : memref<3x1x352xf32, #tpu.memory_space<vmem>>, vector<1x1x256xf32>,
    %c2_98 = arith.constant 2 : index
    %c0_99 = arith.constant 0 : index
    %c32_100 = arith.constant 32 : index
    %528 = vector.load %arg4[%c2_98, %c0_99, %c32_100] : memref<3x1x352xf32, #tpu.memory_space<vmem>>, vector<1x1x256xf32>
    %529 = vector.shape_cast %528 : vector<1x1x256xf32> to vector<1x256xf32>
    %530 = arith.addf %524, %529 : vector<1x256xf32>
    %531 = arith.addf %530, %487 : vector<1x256xf32>
    %c2_101 = arith.constant 2 : index
    %c0_102 = arith.constant 0 : index
    %c48_103 = arith.constant 48 : index
    %532 = vector.load %arg4[%c2_101, %c0_102, %c48_103] : memref<3x1x352xf32, #tpu.memory_space<vmem>>, vector<1x1x256xf32>
    %533 = vector.shape_cast %532 : vector<1x1x256xf32> to vector<1x256xf32>
    %534 = vector.shape_cast %495 : vector<1x256xf32> to vector<1x1x256xf32>
    tpu.vector_store %arg4[%c2_101, %c0_102, %c48_103], %534 {strides = array<i32>} : memref<3x1x352xf32, #tpu.memory_space<vmem>>, vector<1x1x256xf32>,
    %c2_104 = arith.constant 2 : index
    %c0_105 = arith.constant 0 : index
    %c64_106 = arith.constant 64 : index
    %535 = vector.load %arg4[%c2_104, %c0_105, %c64_106] : memref<3x1x352xf32, #tpu.memory_space<vmem>>, vector<1x1x256xf32>
    %536 = vector.shape_cast %535 : vector<1x1x256xf32> to vector<1x256xf32>
    %537 = arith.addf %531, %536 : vector<1x256xf32>
    %c2_107 = arith.constant 2 : index
    %c0_108 = arith.constant 0 : index
    %c48_109 = arith.constant 48 : index
    %538 = vector.load %arg4[%c2_107, %c0_108, %c48_109] : memref<3x1x352xf32, #tpu.memory_space<vmem>>, vector<1x1x256xf32>
    %539 = vector.shape_cast %538 : vector<1x1x256xf32> to vector<1x256xf32>
    %540 = vector.shape_cast %503 : vector<1x256xf32> to vector<1x1x256xf32>
    tpu.vector_store %arg4[%c2_107, %c0_108, %c48_109], %540 {strides = array<i32>} : memref<3x1x352xf32, #tpu.memory_space<vmem>>, vector<1x1x256xf32>,
    %c2_110 = arith.constant 2 : index
    %c0_111 = arith.constant 0 : index
    %c80_112 = arith.constant 80 : index
    %541 = vector.load %arg4[%c2_110, %c0_111, %c80_112] : memref<3x1x352xf32, #tpu.memory_space<vmem>>, vector<1x1x256xf32>
    %542 = vector.shape_cast %541 : vector<1x1x256xf32> to vector<1x256xf32>
    %543 = arith.addf %537, %542 : vector<1x256xf32>
    %c2_113 = arith.constant 2 : index
    %c0_114 = arith.constant 0 : index
    %c48_115 = arith.constant 48 : index
    %544 = vector.load %arg4[%c2_113, %c0_114, %c48_115] : memref<3x1x352xf32, #tpu.memory_space<vmem>>, vector<1x1x256xf32>
    %545 = vector.shape_cast %544 : vector<1x1x256xf32> to vector<1x256xf32>
    %546 = vector.shape_cast %511 : vector<1x256xf32> to vector<1x1x256xf32>
    tpu.vector_store %arg4[%c2_113, %c0_114, %c48_115], %546 {strides = array<i32>} : memref<3x1x352xf32, #tpu.memory_space<vmem>>, vector<1x1x256xf32>,
    %c2_116 = arith.constant 2 : index
    %c0_117 = arith.constant 0 : index
    %c96_118 = arith.constant 96 : index
    %547 = vector.load %arg4[%c2_116, %c0_117, %c96_118] : memref<3x1x352xf32, #tpu.memory_space<vmem>>, vector<1x1x256xf32>
    %548 = vector.shape_cast %547 : vector<1x1x256xf32> to vector<1x256xf32>
    %549 = arith.addf %543, %548 : vector<1x256xf32>
    %550 = arith.negf %549 : vector<1x256xf32>
    %551 = math.exp %550 : vector<1x256xf32>
    %cst_119 = arith.constant 1.000000e+00 : f32
    %552 = vector.broadcast %cst_119 : f32 to vector<1x256xf32>
    %553 = arith.addf %552, %551 : vector<1x256xf32>
    %554 = arith.divf %552, %553 : vector<1x256xf32>
    %c0_120 = arith.constant 0 : index
    %c0_121 = arith.constant 0 : index
    %c0_122 = arith.constant 0 : index
    %555 = vector.load %arg2[%c0_120, %c0_121, %c0_122] : memref<1x4x256xf32, #tpu.memory_space<vmem>>, vector<1x4x256xf32>
    %556 = vector.shape_cast %554 : vector<1x256xf32> to vector<1x1x256xf32>
    %557 = vector.broadcast %556 : vector<1x1x256xf32> to vector<1x4x256xf32>
    %558 = arith.mulf %555, %557 : vector<1x4x256xf32>
    %c0_123 = arith.constant 0 : index
    %c0_124 = arith.constant 0 : index
    %c0_125 = arith.constant 0 : index
    %559 = vector.load %arg3[%c0_123, %c0_124, %c0_125] : memref<1x4x256xf32, #tpu.memory_space<vmem>>, vector<1x4x256xf32>
    tpu.vector_store %arg3[%c0_123, %c0_124, %c0_125], %558 {strides = array<i32>} : memref<1x4x256xf32, #tpu.memory_space<vmem>>, vector<1x4x256xf32>,
    return
  }
  func.func @transform_0(%arg0: i32) -> i32 {
    %c0_i32 = arith.constant 0 : i32
    %c0_i32_0 = arith.constant 0 : i32
    return %c0_i32 : i32
  }
  func.func @transform_1(%arg0: i32) -> (i32, i32, i32) {
    %c0_i32 = arith.constant 0 : i32
    %c0_i32_0 = arith.constant 0 : i32
    %c0_i32_1 = arith.constant 0 : i32
    return %arg0, %c0_i32, %c0_i32_0 : i32, i32, i32
  }
  func.func @transform_2(%arg0: i32) -> (i32, i32, i32) {
    %c0_i32 = arith.constant 0 : i32
    %c0_i32_0 = arith.constant 0 : i32
    %c0_i32_1 = arith.constant 0 : i32
    return %arg0, %c0_i32, %c0_i32_0 : i32, i32, i32
  }
}

</mosaic_0001>

<llo_original>
// kernel: _spatial_attention_impl.1
$region0: #{_spatial_attention_impl.1}
  #allocation0 [shape = 'u32[]', space=smem, size = 0x4, offset = 0x4, fixed_abs, tag = 'smem constant byte address 0x4 - core index']
  #allocation1 [shape = 'u32[144,128]{1,0:T(1,128)}', space=vmem, size = 0x12000, scoped, tag = 'internal scratch']
  #allocation2 [shape = 'f32[3,1,352]{2,1,0:T(1,128)}', space=vmem, size = 0x1200, scoped, tag = 'scratch operand']
  %s0 = inlined_call_operand.vmem [shape: f32[98], index: 0, kind: input, shape index: {}]
  %s1 = inlined_call_operand.vmem [shape: f32[2,4,256], index: 1, kind: input, shape index: {}]
  %s2 = inlined_call_operand.vmem [shape: f32[2,4,256], index: 2, kind: output, shape index: {}]
  %s3 = sld [smem:[#allocation0]]
  $region45: #{_spatial_attention_impl.1} parent=0
    _
  %s5 = ssub.s32 1, %s3
  %s6 = scalar_select 0, %s5, %s3
  $region1: #{_spatial_attention_impl.1} parent=0
    #allocation3 [shape = 'u8[512]{0}', space=smem, size = 0x200, scoped, tag = 'input window, operand 0, single buffered']
    #allocation4 [shape = 's32[2]{0}', space=sflag, size = 0x8, scoped, tag = 'scoped memory for _spatial_attention_impl.1']
    %7 = vsyncpa [#allocation4], 0
    loop: start=0, step=1, limit=4
    $region2: #{_spatial_attention_impl.1} parent=1 // loop_pre_header
      _
    $region3: #{_spatial_attention_impl.1} parent=1 // loop_header
      %s9 = sphi 0, %s13
      %p10 = scmp.ge.s32.totalorder %s9, 4
      %s17 = sphi 0, %s17
      %s19 = sphi 0, %s17
      %s20 = sphi 0, %s19
      %s34 = sphi 0, %s20
      %s40 = sphi 0, %s42
      %s43 = sphi 0, %s40
      %s44 = sphi 0, %s43
      %s60 = sphi 0, %s44
      %s66 = sphi 0, %s68
      %s69 = sphi 0, %s66
      %s70 = sphi 0, %s69
      %s86 = sphi 0, %s70
    $region4: #{_spatial_attention_impl.1} parent=1 // loop_header_branch
      %12 = sbr.rel (%p10) target = $region8
    $region5: #{_spatial_attention_impl.1} parent=1 // loop_body
      %s14 = ssub.s32 %s9, 1
      %s15 = ssub.s32 %s9, 2
      %s16 = sadd.s32 %s9, 1
      %s18 = sadd.s32 %s17, 1
      %p21 = scmp.eq.s32.totalorder %s9, 1
      %p22 = scmp.ne.s32.totalorder %s17, %s19
      %p23 = scmp.eq.s32.totalorder %s9, 0
      %p24 = por %p22, %p23
      %p25 = scmp.ne.s32.totalorder %s17, %s19
      %p26 = scmp.eq.s32.totalorder %s14, 1
      %p27 = por %p25, %p26
      %p28 = scmp.ne.s32.totalorder %s19, %s20
      %p29 = scmp.eq.s32.totalorder %s14, 0
      %p30 = por %p28, %p29
      %p31 = scmp.ne.s32.totalorder %s19, %s20
      %p32 = scmp.eq.s32.totalorder %s15, 1
      %p33 = por %p31, %p32
      %p35 = scmp.ne.s32.totalorder %s20, %s34
      %p36 = scmp.eq.s32.totalorder %s15, 0
      %p37 = por %p35, %p36
      %s38 = ssub.s32 %s9, %s16
      %p39 = scmp.eq.s32.totalorder %s38, 0
      %s41 = sadd.s32 %s40, 1
      %s42 = scalar_select %p39, %s40, %s41
      %p45 = pneg %p39
      %p46 = scmp.eq.s32.totalorder %s9, 1
      %p47 = por %p45, %p46
      %p48 = scmp.ne.s32.totalorder %s40, %s43
      %p49 = scmp.eq.s32.totalorder %s9, 0
      %p50 = por %p48, %p49
      %p51 = scmp.ne.s32.totalorder %s40, %s43
      %p52 = scmp.eq.s32.totalorder %s14, 1
      %p53 = por %p51, %p52
      %p54 = scmp.ne.s32.totalorder %s43, %s44
      %p55 = scmp.eq.s32.totalorder %s14, 0
      %p56 = por %p54, %p55
      %p57 = scmp.ne.s32.totalorder %s43, %s44
      %p58 = scmp.eq.s32.totalorder %s15, 1
      %p59 = por %p57, %p58
      %p61 = scmp.ne.s32.totalorder %s44, %s60
      %p62 = scmp.eq.s32.totalorder %s15, 0
      %p63 = por %p61, %p62
      %s64 = ssub.s32 %s9, %s16
      %p65 = scmp.eq.s32.totalorder %s64, 0
      %s67 = sadd.s32 %s66, 1
      %s68 = scalar_select %p65, %s66, %s67
      %p71 = pneg %p65
      %p72 = scmp.eq.s32.totalorder %s9, 1
      %p73 = por %p71, %p72
      %p74 = scmp.ne.s32.totalorder %s66, %s69
      %p75 = scmp.eq.s32.totalorder %s9, 0
      %p76 = por %p74, %p75
      %p77 = scmp.ne.s32.totalorder %s66, %s69
      %p78 = scmp.eq.s32.totalorder %s14, 1
      %p79 = por %p77, %p78
      %p80 = scmp.ne.s32.totalorder %s69, %s70
      %p81 = scmp.eq.s32.totalorder %s14, 0
      %p82 = por %p80, %p81
      %p83 = scmp.ne.s32.totalorder %s69, %s70
      %p84 = scmp.eq.s32.totalorder %s15, 1
      %p85 = por %p83, %p84
      %p87 = scmp.ne.s32.totalorder %s70, %s86
      %p88 = scmp.eq.s32.totalorder %s15, 0
      %p89 = por %p87, %p88
      %p90 = scmp.le.s32.totalorder 1, %s9
      %p91 = scmp.lt.s32.totalorder %s9, 3
      %p92 = pnand %p90, %p91
      %p93 = pneg %p92
      // Predicated region
      $region9: #{_spatial_attention_impl.1} parent=5 // pred_check
        _
      $region10: #{_spatial_attention_impl.1} parent=5 // pred_check_branch
        %95 = sbr.rel (%p92) target = $region12
      $region11: #{_spatial_attention_impl.1} parent=5 // pred_region
        %s96 = ssub.s32 %s9, 1
        // Predicated region
        $region13: #{_spatial_attention_impl.1} parent=11 // pred_check
          %p97 = pneg %p30
        $region14: #{_spatial_attention_impl.1} parent=11 // pred_check_branch
          %99 = sbr.rel (%p97) target = $region16
        $region15: #{_spatial_attention_impl.1} parent=11 // pred_region
          %s101 = ssub.s32 16, 16
          %102 = vsyncadd [#allocation4], %s101
          %s104 = sshll.u32 %s0, 4
          %s105 = int_to_ptr.vmem [resolvable:$true] %s104
          %107 = dma.vmem_to_smem %s105, 16, [#allocation3], [#allocation4]
        $region16: #{_spatial_attention_impl.1} parent=11 // pred_fallthru
          _
      $region12: #{_spatial_attention_impl.1} parent=5 // pred_fallthru
        _
      %p108 = scmp.lt.s32.totalorder %s9, 2
      // Predicated region
      $region17: #{_spatial_attention_impl.1} parent=5 // pred_check
        %p109 = pneg %p108
      $region18: #{_spatial_attention_impl.1} parent=5 // pred_check_branch
        %111 = sbr.rel (%p109) target = $region20
      $region19: #{_spatial_attention_impl.1} parent=5 // pred_region
        // Predicated region
        $region21: #{_spatial_attention_impl.1} parent=19 // pred_check
          %p112 = pneg %p50
        $region22: #{_spatial_attention_impl.1} parent=19 // pred_check_branch
          %114 = sbr.rel (%p112) target = $region24
        $region23: #{_spatial_attention_impl.1} parent=19 // pred_region
          %p115 = scmp.lt.s32.totalorder %s9, 1
          %s116 = scalar_select %p115, %s9, 1
          %s117 = smul.addr %s116, 2
          %s118 = smul.addr %s117, 4
          %s119 = scalar_lea.vmem %s1, %s118
        $region24: #{_spatial_attention_impl.1} parent=19 // pred_fallthru
          _
      $region20: #{_spatial_attention_impl.1} parent=5 // pred_fallthru
        _
      %p120 = scmp.le.s32.totalorder 1, %s9
      %p121 = scmp.lt.s32.totalorder %s9, 3
      %p122 = pnand %p120, %p121
      %p123 = pneg %p122
      // Predicated region
      $region25: #{_spatial_attention_impl.1} parent=5 // pred_check
        _
      $region26: #{_spatial_attention_impl.1} parent=5 // pred_check_branch
        %125 = sbr.rel (%p122) target = $region28
      $region27: #{_spatial_attention_impl.1} parent=5 // pred_region
        %s126 = ssub.s32 %s9, 1
        // Predicated region
        $region29: #{_spatial_attention_impl.1} parent=27 // pred_check
          %p127 = pneg %p30
        $region30: #{_spatial_attention_impl.1} parent=27 // pred_check_branch
          %129 = sbr.rel (%p127) target = $region32
        $region31: #{_spatial_attention_impl.1} parent=27 // pred_region
          %130 = dma.done [#allocation4], 16
        $region32: #{_spatial_attention_impl.1} parent=27 // pred_fallthru
          _
        %131 = sfence
        %p132 = pneg %p30
        %p133 = pneg %p27
        %p134 = scmp.lt.s32.totalorder %s14, 1
        %s135 = scalar_select %p134, %s14, 1
        %s136 = smul.addr %s135, 2
        %s137 = smul.addr %s136, 4
        %s138 = scalar_lea.vmem %s1, %s137
        %p139 = pneg %p56
        %p140 = pneg %p53
        %p141 = pneg %p82
        %p142 = pneg %p79
        %p143 = scmp.lt.s32.totalorder %s14, 1
        %s144 = scalar_select %p143, %s14, 1
        %s145 = smul.addr %s144, 2
        %s146 = smul.addr %s145, 4
        %s147 = scalar_lea.vmem %s2, %s146
        %p148 = scmp.lt.s32.totalorder %s14, 1
        %s149 = scalar_select %p148, %s14, 1
        %s150 = smul.addr %s149, 2
        %s151 = smul.addr %s150, 4
        %s152 = scalar_lea.vmem %s1, %s151
        %p153 = scmp.lt.s32.totalorder %s14, 1
        %s154 = scalar_select %p153, %s14, 1
        %s155 = smul.addr %s154, 2
        %s156 = smul.addr %s155, 4
        %s157 = scalar_lea.vmem %s2, %s156
        %v158 = vld [vmem:[%s152] sm:$0xff]
        %v160 = vcombine.high %v158, %v158
        %vm162 = vcmask 1043456
        %v163 = vsel %vm162, %v158, 0.0
        %v164 = vrot.slane %v163, 4
        %v165 = vadd.f32 %v163, %v164
        %v166 = vrot.slane %v165, 2
        %v167 = vadd.f32 %v165, %v166
        %v168 = vrot.slane %v167, 1
        %v169 = vadd.f32 %v167, %v168
        %v170 = vsel %vm162, %v160, 0.0
        %v171 = vrot.slane %v170, 4
        %v172 = vadd.f32 %v170, %v171
        %v173 = vrot.slane %v172, 2
        %v174 = vadd.f32 %v172, %v173
        %v175 = vrot.slane %v174, 1
        %v176 = vadd.f32 %v174, %v175
        %v177 = vsel %vm162, %v158, -inf
        %v178 = vrot.slane %v177, 4
        %v179 = vmax.f32 %v177, %v178
        %v180 = vrot.slane %v179, 2
        %v181 = vmax.f32 %v179, %v180
        %v182 = vrot.slane %v181, 1
        %v183 = vmax.f32 %v181, %v182
        %v184 = vsel %vm162, %v160, -inf
        %v185 = vrot.slane %v184, 4
        %v186 = vmax.f32 %v184, %v185
        %v187 = vrot.slane %v186, 2
        %v188 = vmax.f32 %v186, %v187
        %v189 = vrot.slane %v188, 1
        %v190 = vmax.f32 %v188, %v189
        %v191 = vmul.f32 %v169, 0.25
        %v192 = vmul.f32 %v176, 0.25
        %v193 = vlaneseq
        %vm194 = vcmp.ge.s32.totalorder %v193, 0
        %vm195 = vcmp.lt.s32.totalorder %v193, 48
        %vm196 = vmand %vm194, %vm195
        %197 = vst.msk [vmem:[#allocation2] sm:$0x1] %vm196, 0.0
        %198 = vst.msk [vmem:[#allocation2 + $0x3] sm:$0x1] %vm196, 0.0
        %199 = vst.msk [vmem:[#allocation2 + $0x6] sm:$0x1] %vm196, 0.0
        %vm200 = vcmp.ge.s32.totalorder %v193, 48
        %vm201 = vcmp.lt.s32.totalorder %v193, 96
        %vm202 = vmand %vm200, %vm201
        %203 = vst.msk [vmem:[#allocation2 + $0x2] sm:$0x1] %vm202, 0.0
        %204 = vst.msk [vmem:[#allocation2 + $0x5] sm:$0x1] %vm202, 0.0
        %205 = vst.msk [vmem:[#allocation2 + $0x8] sm:$0x1] %vm202, 0.0
        %v208 = vcombine.low %v191, %v192
        %v210 = vunpack.c.l.s4 1966171168
        %v211 = vunpack.c.0.s8 %v210
        %v212 = vlaneseq
        %v213 = vshrl.u32 %v212, 7
        %v214 = vsub.s32 %v211, %v213
        %v215 = vrot.slane %v208, %v214
        %v217 = vunpack.c.l.s4 1966171168
        %v218 = vunpack.c.0.s8 %v217
        %v219 = vlaneseq
        %v220 = vshrl.u32 %v219, 7
        %v221 = vsub.s32 %v218, %v220
        %v222 = vrot.slane %v215, %v221
        %223 = vrot.lane.b32.xlu0 %v222, 48
        %v224 = vpop.permute.xlu0 %223
        %v225 = vrot.slane %v224, 7
        %vm226 = vcmask 392192
        %v227 = vsel %vm226, %v225, %v224
        %vm229 = vcmp.lt.s32.totalorder %v193, 304
        %vm230 = vmand %vm200, %vm229
        %231 = vst.msk [vmem:[#allocation2] sm:$0x7] %vm230, %v227
        %v234 = vcombine.low %v183, %v190
        %v236 = vunpack.c.l.s4 1966171168
        %v237 = vunpack.c.0.s8 %v236
        %v238 = vlaneseq
        %v239 = vshrl.u32 %v238, 7
        %v240 = vsub.s32 %v237, %v239
        %v241 = vrot.slane %v234, %v240
        %v243 = vunpack.c.l.s4 1966171168
        %v244 = vunpack.c.0.s8 %v243
        %v245 = vlaneseq
        %v246 = vshrl.u32 %v245, 7
        %v247 = vsub.s32 %v244, %v246
        %v248 = vrot.slane %v241, %v247
        %249 = vrot.lane.b32.xlu0 %v248, 48
        %v250 = vpop.permute.xlu0 %249
        %v251 = vrot.slane %v250, 7
        %v252 = vsel %vm226, %v251, %v250
        %s254 = scalar_lea.vmem [#allocation2], 3
        %255 = vst.msk [vmem:[%s254] sm:$0x7] %vm230, %v252
        %v256 = vlaneseq
        %v257 = vand.u32 %v256, 127
        %v258 = vadd.s32 %v257, 128
        %vm259 = vcmp.lt.s32.totalorder %v257, 0
        %v260 = vsub.s32 0, %v257
        %v261 = vsel %vm259, %v260, %v257
        %v262 = vshrl.u32 %v261, 4
        %v263 = vand.u32 %v261, 15
        %v264 = vsub.s32 0, %v263
        %v265 = vsel %vm259, %v264, %v263
        %vm266 = vcmp.lt.s32.totalorder %v258, 0
        %v267 = vsub.s32 0, %v258
        %v268 = vsel %vm266, %v267, %v258
        %v269 = vshrl.u32 %v268, 4
        %v270 = vand.u32 %v268, 15
        %v271 = vsub.s32 0, %v270
        %v272 = vsel %vm266, %v271, %v270
        %vm273 = vcmp.ne.s32.totalorder %v265, 0
        %vm274 = vcmp.ne.s32.totalorder %v272, 0
        %vm275 = vcmp.lt.s32.totalorder %v265, 0
        %vm276 = vcmp.lt.s32.totalorder %v272, 0
        %vm277 = vmand %vm275, %vm273
        %vm278 = vmand %vm276, %vm274
        %v279 = vadd.s32 %v265, 16
        %v280 = vadd.s32 %v272, 16
        %v281 = vsel %vm277, %v279, %v265
        %v282 = vsel %vm278, %v280, %v272
        %v283 = vld [vmem:[#allocation2] sm:$0x7]
        %v284 = vld [vmem:[%s254] sm:$0x7]
        %vm285 = vcmp.ge.s32.totalorder %v281, 3
        %vm286 = vcmp.ge.s32.totalorder %v282, 3
        %vm287 = vcmp.lt.s32.totalorder %v281, 19
        %vm288 = vcmp.lt.s32.totalorder %v282, 19
        %vm289 = vmand %vm285, %vm287
        %vm290 = vmand %vm286, %vm288
        %v292 = vlaneseq
        %v293 = vshrl.u32 %v292, 7
        %v294 = vsub.s32 0, %v293
        %v295 = vrot.slane %v283, %v294
        %v296 = vlaneseq
        %v297 = vshrl.u32 %v296, 7
        %v298 = vsub.s32 1, %v297
        %v299 = vrot.slane %v283, %v298
        %v300 = vlaneseq
        %v301 = vshrl.u32 %v300, 7
        %v302 = vsub.s32 2, %v301
        %v303 = vrot.slane %v283, %v302
        %304 = vrot.lane.b32.xlu0 %v295, 83
        %v305 = vpop.permute.xlu0 %304
        %306 = vrot.lane.b32.xlu0 %v299, 83
        %v307 = vpop.permute.xlu0 %306
        %308 = vrot.lane.b32.xlu0 %v303, 83
        %v309 = vpop.permute.xlu0 %308
        %vm310 = vcmask 678912
        %v311 = vsel %vm310, %v305, %v307
        %v312 = vsel %vm310, %v307, %v309
        %v315 = vsel %vm289, %v311, 0.0
        %v316 = vsel %vm290, %v312, 0.0
        %v318 = vlaneseq
        %v319 = vshrl.u32 %v318, 7
        %v320 = vsub.s32 0, %v319
        %v321 = vrot.slane %v284, %v320
        %v322 = vlaneseq
        %v323 = vshrl.u32 %v322, 7
        %v324 = vsub.s32 1, %v323
        %v325 = vrot.slane %v284, %v324
        %v326 = vlaneseq
        %v327 = vshrl.u32 %v326, 7
        %v328 = vsub.s32 2, %v327
        %v329 = vrot.slane %v284, %v328
        %330 = vrot.lane.b32.xlu0 %v321, 83
        %v331 = vpop.permute.xlu0 %330
        %332 = vrot.lane.b32.xlu0 %v325, 83
        %v333 = vpop.permute.xlu0 %332
        %334 = vrot.lane.b32.xlu0 %v329, 83
        %v335 = vpop.permute.xlu0 %334
        %v336 = vsel %vm310, %v331, %v333
        %v337 = vsel %vm310, %v333, %v335
        %v340 = vsel %vm289, %v336, 0.0
        %v341 = vsel %vm290, %v337, 0.0
        %s342 = sld [smem:[#allocation3]]
        %s343 = sld [smem:[#allocation3 + $0x31]]
        %v344 = vstv %s342
        %v345 = vmul.f32 %v344, %v315
        %v346 = vmul.f32 %v344, %v316
        %v347 = vadd.f32 %v345, 0.0
        %v348 = vadd.f32 %v346, 0.0
        %v349 = vstv %s343
        %v350 = vmul.f32 %v349, %v340
        %v351 = vmul.f32 %v349, %v341
        %v352 = vadd.f32 %v347, %v350
        %v353 = vadd.f32 %v348, %v351
        %s354 = sld [smem:[#allocation3 + $0x7]]
        %s355 = sld [smem:[#allocation3 + $0x38]]
        %v356 = vstv %s354
        %v357 = vmul.f32 %v356, %v315
        %v358 = vmul.f32 %v356, %v316
        %v359 = vadd.f32 %v357, 0.0
        %v360 = vadd.f32 %v358, 0.0
        %v361 = vstv %s355
        %v362 = vmul.f32 %v361, %v340
        %v363 = vmul.f32 %v361, %v341
        %v364 = vadd.f32 %v359, %v362
        %v365 = vadd.f32 %v360, %v363
        %s366 = sld [smem:[#allocation3 + $0xe]]
        %s367 = sld [smem:[#allocation3 + $0x3f]]
        %v368 = vstv %s366
        %v369 = vmul.f32 %v368, %v315
        %v370 = vmul.f32 %v368, %v316
        %v371 = vadd.f32 %v369, 0.0
        %v372 = vadd.f32 %v370, 0.0
        %v373 = vstv %s367
        %v374 = vmul.f32 %v373, %v340
        %v375 = vmul.f32 %v373, %v341
        %v376 = vadd.f32 %v371, %v374
        %v377 = vadd.f32 %v372, %v375
        %s378 = sld [smem:[#allocation3 + $0x15]]
        %s379 = sld [smem:[#allocation3 + $0x46]]
        %v380 = vstv %s378
        %v381 = vmul.f32 %v380, %v315
        %v382 = vmul.f32 %v380, %v316
        %v383 = vadd.f32 %v381, 0.0
        %v384 = vadd.f32 %v382, 0.0
        %v385 = vstv %s379
        %v386 = vmul.f32 %v385, %v340
        %v387 = vmul.f32 %v385, %v341
        %v388 = vadd.f32 %v383, %v386
        %v389 = vadd.f32 %v384, %v387
        %s390 = sld [smem:[#allocation3 + $0x1c]]
        %s391 = sld [smem:[#allocation3 + $0x4d]]
        %v392 = vstv %s390
        %v393 = vmul.f32 %v392, %v315
        %v394 = vmul.f32 %v392, %v316
        %v395 = vadd.f32 %v393, 0.0
        %v396 = vadd.f32 %v394, 0.0
        %v397 = vstv %s391
        %v398 = vmul.f32 %v397, %v340
        %v399 = vmul.f32 %v397, %v341
        %v400 = vadd.f32 %v395, %v398
        %v401 = vadd.f32 %v396, %v399
        %s402 = sld [smem:[#allocation3 + $0x23]]
        %s403 = sld [smem:[#allocation3 + $0x54]]
        %v404 = vstv %s402
        %v405 = vmul.f32 %v404, %v315
        %v406 = vmul.f32 %v404, %v316
        %v407 = vadd.f32 %v405, 0.0
        %v408 = vadd.f32 %v406, 0.0
        %v409 = vstv %s403
        %v410 = vmul.f32 %v409, %v340
        %v411 = vmul.f32 %v409, %v341
        %v412 = vadd.f32 %v407, %v410
        %v413 = vadd.f32 %v408, %v411
        %s414 = sld [smem:[#allocation3 + $0x2a]]
        %s415 = sld [smem:[#allocation3 + $0x5b]]
        %v416 = vstv %s414
        %v417 = vmul.f32 %v416, %v315
        %v418 = vmul.f32 %v416, %v316
        %v419 = vadd.f32 %v417, 0.0
        %v420 = vadd.f32 %v418, 0.0
        %v421 = vstv %s415
        %v422 = vmul.f32 %v421, %v340
        %v423 = vmul.f32 %v421, %v341
        %v424 = vadd.f32 %v419, %v422
        %v425 = vadd.f32 %v420, %v423
        %vm426 = vcmp.ge.s32.totalorder %v281, 2
        %vm427 = vcmp.ge.s32.totalorder %v282, 2
        %vm428 = vcmp.lt.s32.totalorder %v281, 18
        %vm429 = vcmp.lt.s32.totalorder %v282, 18
        %vm430 = vmand %vm426, %vm428
        %vm431 = vmand %vm427, %vm429
        %432 = vrot.lane.b32.xlu0 %v295, 82
        %v433 = vpop.permute.xlu0 %432
        %434 = vrot.lane.b32.xlu0 %v299, 82
        %v435 = vpop.permute.xlu0 %434
        %436 = vrot.lane.b32.xlu0 %v303, 82
        %v437 = vpop.permute.xlu0 %436
        %vm438 = vcmask 670720
        %v439 = vsel %vm438, %v433, %v435
        %v440 = vsel %vm438, %v435, %v437
        %v443 = vsel %vm430, %v439, 0.0
        %v444 = vsel %vm431, %v440, 0.0
        %445 = vrot.lane.b32.xlu0 %v321, 82
        %v446 = vpop.permute.xlu0 %445
        %447 = vrot.lane.b32.xlu0 %v325, 82
        %v448 = vpop.permute.xlu0 %447
        %449 = vrot.lane.b32.xlu0 %v329, 82
        %v450 = vpop.permute.xlu0 %449
        %v451 = vsel %vm438, %v446, %v448
        %v452 = vsel %vm438, %v448, %v450
        %v455 = vsel %vm430, %v451, 0.0
        %v456 = vsel %vm431, %v452, 0.0
        %s457 = sld [smem:[#allocation3 + $0x1]]
        %s458 = sld [smem:[#allocation3 + $0x32]]
        %v459 = vstv %s457
        %v460 = vmul.f32 %v459, %v443
        %v461 = vmul.f32 %v459, %v444
        %v462 = vadd.f32 %v352, %v460
        %v463 = vadd.f32 %v353, %v461
        %v464 = vstv %s458
        %v465 = vmul.f32 %v464, %v455
        %v466 = vmul.f32 %v464, %v456
        %v467 = vadd.f32 %v462, %v465
        %v468 = vadd.f32 %v463, %v466
        %s469 = sld [smem:[#allocation3 + $0x8]]
        %s470 = sld [smem:[#allocation3 + $0x39]]
        %v471 = vstv %s469
        %v472 = vmul.f32 %v471, %v443
        %v473 = vmul.f32 %v471, %v444
        %v474 = vadd.f32 %v364, %v472
        %v475 = vadd.f32 %v365, %v473
        %v476 = vstv %s470
        %v477 = vmul.f32 %v476, %v455
        %v478 = vmul.f32 %v476, %v456
        %v479 = vadd.f32 %v474, %v477
        %v480 = vadd.f32 %v475, %v478
        %s481 = sld [smem:[#allocation3 + $0xf]]
        %s482 = sld [smem:[#allocation3 + $0x40]]
        %v483 = vstv %s481
        %v484 = vmul.f32 %v483, %v443
        %v485 = vmul.f32 %v483, %v444
        %v486 = vadd.f32 %v376, %v484
        %v487 = vadd.f32 %v377, %v485
        %v488 = vstv %s482
        %v489 = vmul.f32 %v488, %v455
        %v490 = vmul.f32 %v488, %v456
        %v491 = vadd.f32 %v486, %v489
        %v492 = vadd.f32 %v487, %v490
        %s493 = sld [smem:[#allocation3 + $0x16]]
        %s494 = sld [smem:[#allocation3 + $0x47]]
        %v495 = vstv %s493
        %v496 = vmul.f32 %v495, %v443
        %v497 = vmul.f32 %v495, %v444
        %v498 = vadd.f32 %v388, %v496
        %v499 = vadd.f32 %v389, %v497
        %v500 = vstv %s494
        %v501 = vmul.f32 %v500, %v455
        %v502 = vmul.f32 %v500, %v456
        %v503 = vadd.f32 %v498, %v501
        %v504 = vadd.f32 %v499, %v502
        %s505 = sld [smem:[#allocation3 + $0x1d]]
        %s506 = sld [smem:[#allocation3 + $0x4e]]
        %v507 = vstv %s505
        %v508 = vmul.f32 %v507, %v443
        %v509 = vmul.f32 %v507, %v444
        %v510 = vadd.f32 %v400, %v508
        %v511 = vadd.f32 %v401, %v509
        %v512 = vstv %s506
        %v513 = vmul.f32 %v512, %v455
        %v514 = vmul.f32 %v512, %v456
        %v515 = vadd.f32 %v510, %v513
        %v516 = vadd.f32 %v511, %v514
        %s517 = sld [smem:[#allocation3 + $0x24]]
        %s518 = sld [smem:[#allocation3 + $0x55]]
        %v519 = vstv %s517
        %v520 = vmul.f32 %v519, %v443
        %v521 = vmul.f32 %v519, %v444
        %v522 = vadd.f32 %v412, %v520
        %v523 = vadd.f32 %v413, %v521
        %v524 = vstv %s518
        %v525 = vmul.f32 %v524, %v455
        %v526 = vmul.f32 %v524, %v456
        %v527 = vadd.f32 %v522, %v525
        %v528 = vadd.f32 %v523, %v526
        %s529 = sld [smem:[#allocation3 + $0x2b]]
        %s530 = sld [smem:[#allocation3 + $0x5c]]
        %v531 = vstv %s529
        %v532 = vmul.f32 %v531, %v443
        %v533 = vmul.f32 %v531, %v444
        %v534 = vadd.f32 %v424, %v532
        %v535 = vadd.f32 %v425, %v533
        %v536 = vstv %s530
        %v537 = vmul.f32 %v536, %v455
        %v538 = vmul.f32 %v536, %v456
        %v539 = vadd.f32 %v534, %v537
        %v540 = vadd.f32 %v535, %v538
        %vm541 = vcmp.ge.s32.totalorder %v281, 1
        %vm542 = vcmp.ge.s32.totalorder %v282, 1
        %vm543 = vcmp.lt.s32.totalorder %v281, 17
        %vm544 = vcmp.lt.s32.totalorder %v282, 17
        %vm545 = vmand %vm541, %vm543
        %vm546 = vmand %vm542, %vm544
        %547 = vrot.lane.b32.xlu0 %v295, 81
        %v548 = vpop.permute.xlu0 %547
        %549 = vrot.lane.b32.xlu0 %v299, 81
        %v550 = vpop.permute.xlu0 %549
        %551 = vrot.lane.b32.xlu0 %v303, 81
        %v552 = vpop.permute.xlu0 %551
        %vm553 = vcmask 662528
        %v554 = vsel %vm553, %v548, %v550
        %v555 = vsel %vm553, %v550, %v552
        %v558 = vsel %vm545, %v554, 0.0
        %v559 = vsel %vm546, %v555, 0.0
        %560 = vrot.lane.b32.xlu0 %v321, 81
        %v561 = vpop.permute.xlu0 %560
        %562 = vrot.lane.b32.xlu0 %v325, 81
        %v563 = vpop.permute.xlu0 %562
        %564 = vrot.lane.b32.xlu0 %v329, 81
        %v565 = vpop.permute.xlu0 %564
        %v566 = vsel %vm553, %v561, %v563
        %v567 = vsel %vm553, %v563, %v565
        %v570 = vsel %vm545, %v566, 0.0
        %v571 = vsel %vm546, %v567, 0.0
        %s572 = sld [smem:[#allocation3 + $0x2]]
        %s573 = sld [smem:[#allocation3 + $0x33]]
        %v574 = vstv %s572
        %v575 = vmul.f32 %v574, %v558
        %v576 = vmul.f32 %v574, %v559
        %v577 = vadd.f32 %v467, %v575
        %v578 = vadd.f32 %v468, %v576
        %v579 = vstv %s573
        %v580 = vmul.f32 %v579, %v570
        %v581 = vmul.f32 %v579, %v571
        %v582 = vadd.f32 %v577, %v580
        %v583 = vadd.f32 %v578, %v581
        %s584 = sld [smem:[#allocation3 + $0x9]]
        %s585 = sld [smem:[#allocation3 + $0x3a]]
        %v586 = vstv %s584
        %v587 = vmul.f32 %v586, %v558
        %v588 = vmul.f32 %v586, %v559
        %v589 = vadd.f32 %v479, %v587
        %v590 = vadd.f32 %v480, %v588
        %v591 = vstv %s585
        %v592 = vmul.f32 %v591, %v570
        %v593 = vmul.f32 %v591, %v571
        %v594 = vadd.f32 %v589, %v592
        %v595 = vadd.f32 %v590, %v593
        %s596 = sld [smem:[#allocation3 + $0x10]]
        %s597 = sld [smem:[#allocation3 + $0x41]]
        %v598 = vstv %s596
        %v599 = vmul.f32 %v598, %v558
        %v600 = vmul.f32 %v598, %v559
        %v601 = vadd.f32 %v491, %v599
        %v602 = vadd.f32 %v492, %v600
        %v603 = vstv %s597
        %v604 = vmul.f32 %v603, %v570
        %v605 = vmul.f32 %v603, %v571
        %v606 = vadd.f32 %v601, %v604
        %v607 = vadd.f32 %v602, %v605
        %s608 = sld [smem:[#allocation3 + $0x17]]
        %s609 = sld [smem:[#allocation3 + $0x48]]
        %v610 = vstv %s608
        %v611 = vmul.f32 %v610, %v558
        %v612 = vmul.f32 %v610, %v559
        %v613 = vadd.f32 %v503, %v611
        %v614 = vadd.f32 %v504, %v612
        %v615 = vstv %s609
        %v616 = vmul.f32 %v615, %v570
        %v617 = vmul.f32 %v615, %v571
        %v618 = vadd.f32 %v613, %v616
        %v619 = vadd.f32 %v614, %v617
        %s620 = sld [smem:[#allocation3 + $0x1e]]
        %s621 = sld [smem:[#allocation3 + $0x4f]]
        %v622 = vstv %s620
        %v623 = vmul.f32 %v622, %v558
        %v624 = vmul.f32 %v622, %v559
        %v625 = vadd.f32 %v515, %v623
        %v626 = vadd.f32 %v516, %v624
        %v627 = vstv %s621
        %v628 = vmul.f32 %v627, %v570
        %v629 = vmul.f32 %v627, %v571
        %v630 = vadd.f32 %v625, %v628
        %v631 = vadd.f32 %v626, %v629
        %s632 = sld [smem:[#allocation3 + $0x25]]
        %s633 = sld [smem:[#allocation3 + $0x56]]
        %v634 = vstv %s632
        %v635 = vmul.f32 %v634, %v558
        %v636 = vmul.f32 %v634, %v559
        %v637 = vadd.f32 %v527, %v635
        %v638 = vadd.f32 %v528, %v636
        %v639 = vstv %s633
        %v640 = vmul.f32 %v639, %v570
        %v641 = vmul.f32 %v639, %v571
        %v642 = vadd.f32 %v637, %v640
        %v643 = vadd.f32 %v638, %v641
        %s644 = sld [smem:[#allocation3 + $0x2c]]
        %s645 = sld [smem:[#allocation3 + $0x5d]]
        %v646 = vstv %s644
        %v647 = vmul.f32 %v646, %v558
        %v648 = vmul.f32 %v646, %v559
        %v649 = vadd.f32 %v539, %v647
        %v650 = vadd.f32 %v540, %v648
        %v651 = vstv %s645
        %v652 = vmul.f32 %v651, %v570
        %v653 = vmul.f32 %v651, %v571
        %v654 = vadd.f32 %v649, %v652
        %v655 = vadd.f32 %v650, %v653
        %s656 = sld [smem:[#allocation3 + $0x3]]
        %s657 = sld [smem:[#allocation3 + $0x34]]
        %v658 = vstv %s656
        %v659 = vmul.f32 %v658, %v283
        %v661 = vlaneseq
        %v662 = vshrl.u32 %v661, 7
        %v663 = vsub.s32 0, %v662
        %v664 = vrot.slane %v659, %v663
        %v665 = vlaneseq
        %v666 = vshrl.u32 %v665, 7
        %v667 = vsub.s32 1, %v666
        %v668 = vrot.slane %v659, %v667
        %v669 = vlaneseq
        %v670 = vshrl.u32 %v669, 7
        %v671 = vsub.s32 2, %v670
        %v672 = vrot.slane %v659, %v671
        %673 = vrot.lane.b32.xlu0 %v664, 80
        %v674 = vpop.permute.xlu0 %673
        %675 = vrot.lane.b32.xlu0 %v668, 80
        %v676 = vpop.permute.xlu0 %675
        %677 = vrot.lane.b32.xlu0 %v672, 80
        %v678 = vpop.permute.xlu0 %677
        %vm679 = vcmask 654336
        %v680 = vsel %vm679, %v674, %v676
        %v681 = vsel %vm679, %v676, %v678
        %v684 = vadd.f32 %v582, %v680
        %v685 = vadd.f32 %v583, %v681
        %v686 = vstv %s657
        %v687 = vmul.f32 %v686, %v284
        %v689 = vlaneseq
        %v690 = vshrl.u32 %v689, 7
        %v691 = vsub.s32 0, %v690
        %v692 = vrot.slane %v687, %v691
        %v693 = vlaneseq
        %v694 = vshrl.u32 %v693, 7
        %v695 = vsub.s32 1, %v694
        %v696 = vrot.slane %v687, %v695
        %v697 = vlaneseq
        %v698 = vshrl.u32 %v697, 7
        %v699 = vsub.s32 2, %v698
        %v700 = vrot.slane %v687, %v699
        %701 = vrot.lane.b32.xlu0 %v692, 80
        %v702 = vpop.permute.xlu0 %701
        %703 = vrot.lane.b32.xlu0 %v696, 80
        %v704 = vpop.permute.xlu0 %703
        %705 = vrot.lane.b32.xlu0 %v700, 80
        %v706 = vpop.permute.xlu0 %705
        %v707 = vsel %vm679, %v702, %v704
        %v708 = vsel %vm679, %v704, %v706
        %v711 = vadd.f32 %v684, %v707
        %v712 = vadd.f32 %v685, %v708
        %s713 = sld [smem:[#allocation3 + $0xa]]
        %s714 = sld [smem:[#allocation3 + $0x3b]]
        %v715 = vstv %s713
        %v716 = vmul.f32 %v715, %v283
        %v718 = vlaneseq
        %v719 = vshrl.u32 %v718, 7
        %v720 = vsub.s32 0, %v719
        %v721 = vrot.slane %v716, %v720
        %v722 = vlaneseq
        %v723 = vshrl.u32 %v722, 7
        %v724 = vsub.s32 1, %v723
        %v725 = vrot.slane %v716, %v724
        %v726 = vlaneseq
        %v727 = vshrl.u32 %v726, 7
        %v728 = vsub.s32 2, %v727
        %v729 = vrot.slane %v716, %v728
        %730 = vrot.lane.b32.xlu0 %v721, 80
        %v731 = vpop.permute.xlu0 %730
        %732 = vrot.lane.b32.xlu0 %v725, 80
        %v733 = vpop.permute.xlu0 %732
        %734 = vrot.lane.b32.xlu0 %v729, 80
        %v735 = vpop.permute.xlu0 %734
        %v736 = vsel %vm679, %v731, %v733
        %v737 = vsel %vm679, %v733, %v735
        %v740 = vadd.f32 %v594, %v736
        %v741 = vadd.f32 %v595, %v737
        %v742 = vstv %s714
        %v743 = vmul.f32 %v742, %v284
        %v745 = vlaneseq
        %v746 = vshrl.u32 %v745, 7
        %v747 = vsub.s32 0, %v746
        %v748 = vrot.slane %v743, %v747
        %v749 = vlaneseq
        %v750 = vshrl.u32 %v749, 7
        %v751 = vsub.s32 1, %v750
        %v752 = vrot.slane %v743, %v751
        %v753 = vlaneseq
        %v754 = vshrl.u32 %v753, 7
        %v755 = vsub.s32 2, %v754
        %v756 = vrot.slane %v743, %v755
        %757 = vrot.lane.b32.xlu0 %v748, 80
        %v758 = vpop.permute.xlu0 %757
        %759 = vrot.lane.b32.xlu0 %v752, 80
        %v760 = vpop.permute.xlu0 %759
        %761 = vrot.lane.b32.xlu0 %v756, 80
        %v762 = vpop.permute.xlu0 %761
        %v763 = vsel %vm679, %v758, %v760
        %v764 = vsel %vm679, %v760, %v762
        %v767 = vadd.f32 %v740, %v763
        %v768 = vadd.f32 %v741, %v764
        %s769 = sld [smem:[#allocation3 + $0x11]]
        %s770 = sld [smem:[#allocation3 + $0x42]]
        %v771 = vstv %s769
        %v772 = vmul.f32 %v771, %v283
        %v774 = vlaneseq
        %v775 = vshrl.u32 %v774, 7
        %v776 = vsub.s32 0, %v775
        %v777 = vrot.slane %v772, %v776
        %v778 = vlaneseq
        %v779 = vshrl.u32 %v778, 7
        %v780 = vsub.s32 1, %v779
        %v781 = vrot.slane %v772, %v780
        %v782 = vlaneseq
        %v783 = vshrl.u32 %v782, 7
        %v784 = vsub.s32 2, %v783
        %v785 = vrot.slane %v772, %v784
        %786 = vrot.lane.b32.xlu0 %v777, 80
        %v787 = vpop.permute.xlu0 %786
        %788 = vrot.lane.b32.xlu0 %v781, 80
        %v789 = vpop.permute.xlu0 %788
        %790 = vrot.lane.b32.xlu0 %v785, 80
        %v791 = vpop.permute.xlu0 %790
        %v792 = vsel %vm679, %v787, %v789
        %v793 = vsel %vm679, %v789, %v791
        %v796 = vadd.f32 %v606, %v792
        %v797 = vadd.f32 %v607, %v793
        %v798 = vstv %s770
        %v799 = vmul.f32 %v798, %v284
        %v801 = vlaneseq
        %v802 = vshrl.u32 %v801, 7
        %v803 = vsub.s32 0, %v802
        %v804 = vrot.slane %v799, %v803
        %v805 = vlaneseq
        %v806 = vshrl.u32 %v805, 7
        %v807 = vsub.s32 1, %v806
        %v808 = vrot.slane %v799, %v807
        %v809 = vlaneseq
        %v810 = vshrl.u32 %v809, 7
        %v811 = vsub.s32 2, %v810
        %v812 = vrot.slane %v799, %v811
        %813 = vrot.lane.b32.xlu0 %v804, 80
        %v814 = vpop.permute.xlu0 %813
        %815 = vrot.lane.b32.xlu0 %v808, 80
        %v816 = vpop.permute.xlu0 %815
        %817 = vrot.lane.b32.xlu0 %v812, 80
        %v818 = vpop.permute.xlu0 %817
        %v819 = vsel %vm679, %v814, %v816
        %v820 = vsel %vm679, %v816, %v818
        %v823 = vadd.f32 %v796, %v819
        %v824 = vadd.f32 %v797, %v820
        %s825 = sld [smem:[#allocation3 + $0x18]]
        %s826 = sld [smem:[#allocation3 + $0x49]]
        %v827 = vstv %s825
        %v828 = vmul.f32 %v827, %v283
        %v830 = vlaneseq
        %v831 = vshrl.u32 %v830, 7
        %v832 = vsub.s32 0, %v831
        %v833 = vrot.slane %v828, %v832
        %v834 = vlaneseq
        %v835 = vshrl.u32 %v834, 7
        %v836 = vsub.s32 1, %v835
        %v837 = vrot.slane %v828, %v836
        %v838 = vlaneseq
        %v839 = vshrl.u32 %v838, 7
        %v840 = vsub.s32 2, %v839
        %v841 = vrot.slane %v828, %v840
        %842 = vrot.lane.b32.xlu0 %v833, 80
        %v843 = vpop.permute.xlu0 %842
        %844 = vrot.lane.b32.xlu0 %v837, 80
        %v845 = vpop.permute.xlu0 %844
        %846 = vrot.lane.b32.xlu0 %v841, 80
        %v847 = vpop.permute.xlu0 %846
        %v848 = vsel %vm679, %v843, %v845
        %v849 = vsel %vm679, %v845, %v847
        %v852 = vadd.f32 %v618, %v848
        %v853 = vadd.f32 %v619, %v849
        %v854 = vstv %s826
        %v855 = vmul.f32 %v854, %v284
        %v857 = vlaneseq
        %v858 = vshrl.u32 %v857, 7
        %v859 = vsub.s32 0, %v858
        %v860 = vrot.slane %v855, %v859
        %v861 = vlaneseq
        %v862 = vshrl.u32 %v861, 7
        %v863 = vsub.s32 1, %v862
        %v864 = vrot.slane %v855, %v863
        %v865 = vlaneseq
        %v866 = vshrl.u32 %v865, 7
        %v867 = vsub.s32 2, %v866
        %v868 = vrot.slane %v855, %v867
        %869 = vrot.lane.b32.xlu0 %v860, 80
        %v870 = vpop.permute.xlu0 %869
        %871 = vrot.lane.b32.xlu0 %v864, 80
        %v872 = vpop.permute.xlu0 %871
        %873 = vrot.lane.b32.xlu0 %v868, 80
        %v874 = vpop.permute.xlu0 %873
        %v875 = vsel %vm679, %v870, %v872
        %v876 = vsel %vm679, %v872, %v874
        %v879 = vadd.f32 %v852, %v875
        %v880 = vadd.f32 %v853, %v876
        %s881 = sld [smem:[#allocation3 + $0x1f]]
        %s882 = sld [smem:[#allocation3 + $0x50]]
        %v883 = vstv %s881
        %v884 = vmul.f32 %v883, %v283
        %v886 = vlaneseq
        %v887 = vshrl.u32 %v886, 7
        %v888 = vsub.s32 0, %v887
        %v889 = vrot.slane %v884, %v888
        %v890 = vlaneseq
        %v891 = vshrl.u32 %v890, 7
        %v892 = vsub.s32 1, %v891
        %v893 = vrot.slane %v884, %v892
        %v894 = vlaneseq
        %v895 = vshrl.u32 %v894, 7
        %v896 = vsub.s32 2, %v895
        %v897 = vrot.slane %v884, %v896
        %898 = vrot.lane.b32.xlu0 %v889, 80
        %v899 = vpop.permute.xlu0 %898
        %900 = vrot.lane.b32.xlu0 %v893, 80
        %v901 = vpop.permute.xlu0 %900
        %902 = vrot.lane.b32.xlu0 %v897, 80
        %v903 = vpop.permute.xlu0 %902
        %v904 = vsel %vm679, %v899, %v901
        %v905 = vsel %vm679, %v901, %v903
        %v908 = vadd.f32 %v630, %v904
        %v909 = vadd.f32 %v631, %v905
        %v910 = vstv %s882
        %v911 = vmul.f32 %v910, %v284
        %v913 = vlaneseq
        %v914 = vshrl.u32 %v913, 7
        %v915 = vsub.s32 0, %v914
        %v916 = vrot.slane %v911, %v915
        %v917 = vlaneseq
        %v918 = vshrl.u32 %v917, 7
        %v919 = vsub.s32 1, %v918
        %v920 = vrot.slane %v911, %v919
        %v921 = vlaneseq
        %v922 = vshrl.u32 %v921, 7
        %v923 = vsub.s32 2, %v922
        %v924 = vrot.slane %v911, %v923
        %925 = vrot.lane.b32.xlu0 %v916, 80
        %v926 = vpop.permute.xlu0 %925
        %927 = vrot.lane.b32.xlu0 %v920, 80
        %v928 = vpop.permute.xlu0 %927
        %929 = vrot.lane.b32.xlu0 %v924, 80
        %v930 = vpop.permute.xlu0 %929
        %v931 = vsel %vm679, %v926, %v928
        %v932 = vsel %vm679, %v928, %v930
        %v935 = vadd.f32 %v908, %v931
        %v936 = vadd.f32 %v909, %v932
        %s937 = sld [smem:[#allocation3 + $0x26]]
        %s938 = sld [smem:[#allocation3 + $0x57]]
        %v939 = vstv %s937
        %v940 = vmul.f32 %v939, %v283
        %v942 = vlaneseq
        %v943 = vshrl.u32 %v942, 7
        %v944 = vsub.s32 0, %v943
        %v945 = vrot.slane %v940, %v944
        %v946 = vlaneseq
        %v947 = vshrl.u32 %v946, 7
        %v948 = vsub.s32 1, %v947
        %v949 = vrot.slane %v940, %v948
        %v950 = vlaneseq
        %v951 = vshrl.u32 %v950, 7
        %v952 = vsub.s32 2, %v951
        %v953 = vrot.slane %v940, %v952
        %954 = vrot.lane.b32.xlu0 %v945, 80
        %v955 = vpop.permute.xlu0 %954
        %956 = vrot.lane.b32.xlu0 %v949, 80
        %v957 = vpop.permute.xlu0 %956
        %958 = vrot.lane.b32.xlu0 %v953, 80
        %v959 = vpop.permute.xlu0 %958
        %v960 = vsel %vm679, %v955, %v957
        %v961 = vsel %vm679, %v957, %v959
        %v964 = vadd.f32 %v642, %v960
        %v965 = vadd.f32 %v643, %v961
        %v966 = vstv %s938
        %v967 = vmul.f32 %v966, %v284
        %v969 = vlaneseq
        %v970 = vshrl.u32 %v969, 7
        %v971 = vsub.s32 0, %v970
        %v972 = vrot.slane %v967, %v971
        %v973 = vlaneseq
        %v974 = vshrl.u32 %v973, 7
        %v975 = vsub.s32 1, %v974
        %v976 = vrot.slane %v967, %v975
        %v977 = vlaneseq
        %v978 = vshrl.u32 %v977, 7
        %v979 = vsub.s32 2, %v978
        %v980 = vrot.slane %v967, %v979
        %981 = vrot.lane.b32.xlu0 %v972, 80
        %v982 = vpop.permute.xlu0 %981
        %983 = vrot.lane.b32.xlu0 %v976, 80
        %v984 = vpop.permute.xlu0 %983
        %985 = vrot.lane.b32.xlu0 %v980, 80
        %v986 = vpop.permute.xlu0 %985
        %v987 = vsel %vm679, %v982, %v984
        %v988 = vsel %vm679, %v984, %v986
        %v991 = vadd.f32 %v964, %v987
        %v992 = vadd.f32 %v965, %v988
        %s993 = sld [smem:[#allocation3 + $0x2d]]
        %s994 = sld [smem:[#allocation3 + $0x5e]]
        %v995 = vstv %s993
        %v996 = vmul.f32 %v995, %v283
        %v998 = vlaneseq
        %v999 = vshrl.u32 %v998, 7
        %v1000 = vsub.s32 0, %v999
        %v1001 = vrot.slane %v996, %v1000
        %v1002 = vlaneseq
        %v1003 = vshrl.u32 %v1002, 7
        %v1004 = vsub.s32 1, %v1003
        %v1005 = vrot.slane %v996, %v1004
        %v1006 = vlaneseq
        %v1007 = vshrl.u32 %v1006, 7
        %v1008 = vsub.s32 2, %v1007
        %v1009 = vrot.slane %v996, %v1008
        %1010 = vrot.lane.b32.xlu0 %v1001, 80
        %v1011 = vpop.permute.xlu0 %1010
        %1012 = vrot.lane.b32.xlu0 %v1005, 80
        %v1013 = vpop.permute.xlu0 %1012
        %1014 = vrot.lane.b32.xlu0 %v1009, 80
        %v1015 = vpop.permute.xlu0 %1014
        %v1016 = vsel %vm679, %v1011, %v1013
        %v1017 = vsel %vm679, %v1013, %v1015
        %v1020 = vadd.f32 %v654, %v1016
        %v1021 = vadd.f32 %v655, %v1017
        %v1022 = vstv %s994
        %v1023 = vmul.f32 %v1022, %v284
        %v1025 = vlaneseq
        %v1026 = vshrl.u32 %v1025, 7
        %v1027 = vsub.s32 0, %v1026
        %v1028 = vrot.slane %v1023, %v1027
        %v1029 = vlaneseq
        %v1030 = vshrl.u32 %v1029, 7
        %v1031 = vsub.s32 1, %v1030
        %v1032 = vrot.slane %v1023, %v1031
        %v1033 = vlaneseq
        %v1034 = vshrl.u32 %v1033, 7
        %v1035 = vsub.s32 2, %v1034
        %v1036 = vrot.slane %v1023, %v1035
        %1037 = vrot.lane.b32.xlu0 %v1028, 80
        %v1038 = vpop.permute.xlu0 %1037
        %1039 = vrot.lane.b32.xlu0 %v1032, 80
        %v1040 = vpop.permute.xlu0 %1039
        %1041 = vrot.lane.b32.xlu0 %v1036, 80
        %v1042 = vpop.permute.xlu0 %1041
        %v1043 = vsel %vm679, %v1038, %v1040
        %v1044 = vsel %vm679, %v1040, %v1042
        %v1047 = vadd.f32 %v1020, %v1043
        %v1048 = vadd.f32 %v1021, %v1044
        %vm1049 = vcmp.ge.s32.totalorder %v281, 4294967295
        %vm1050 = vcmp.ge.s32.totalorder %v282, 4294967295
        %vm1051 = vcmp.lt.s32.totalorder %v281, 15
        %vm1052 = vcmp.lt.s32.totalorder %v282, 15
        %vm1053 = vmand %vm1049, %vm1051
        %vm1054 = vmand %vm1050, %vm1052
        %1055 = vrot.lane.b32.xlu0 %v295, 79
        %v1056 = vpop.permute.xlu0 %1055
        %1057 = vrot.lane.b32.xlu0 %v299, 79
        %v1058 = vpop.permute.xlu0 %1057
        %1059 = vrot.lane.b32.xlu0 %v303, 79
        %v1060 = vpop.permute.xlu0 %1059
        %vm1061 = vcmask 646144
        %v1062 = vsel %vm1061, %v1056, %v1058
        %v1063 = vsel %vm1061, %v1058, %v1060
        %v1066 = vsel %vm1053, %v1062, 0.0
        %v1067 = vsel %vm1054, %v1063, 0.0
        %1068 = vrot.lane.b32.xlu0 %v321, 79
        %v1069 = vpop.permute.xlu0 %1068
        %1070 = vrot.lane.b32.xlu0 %v325, 79
        %v1071 = vpop.permute.xlu0 %1070
        %1072 = vrot.lane.b32.xlu0 %v329, 79
        %v1073 = vpop.permute.xlu0 %1072
        %v1074 = vsel %vm1061, %v1069, %v1071
        %v1075 = vsel %vm1061, %v1071, %v1073
        %v1078 = vsel %vm1053, %v1074, 0.0
        %v1079 = vsel %vm1054, %v1075, 0.0
        %s1080 = sld [smem:[#allocation3 + $0x4]]
        %s1081 = sld [smem:[#allocation3 + $0x35]]
        %v1082 = vstv %s1080
        %v1083 = vmul.f32 %v1082, %v1066
        %v1084 = vmul.f32 %v1082, %v1067
        %v1085 = vadd.f32 %v711, %v1083
        %v1086 = vadd.f32 %v712, %v1084
        %v1087 = vstv %s1081
        %v1088 = vmul.f32 %v1087, %v1078
        %v1089 = vmul.f32 %v1087, %v1079
        %v1090 = vadd.f32 %v1085, %v1088
        %v1091 = vadd.f32 %v1086, %v1089
        %s1092 = sld [smem:[#allocation3 + $0xb]]
        %s1093 = sld [smem:[#allocation3 + $0x3c]]
        %v1094 = vstv %s1092
        %v1095 = vmul.f32 %v1094, %v1066
        %v1096 = vmul.f32 %v1094, %v1067
        %v1097 = vadd.f32 %v767, %v1095
        %v1098 = vadd.f32 %v768, %v1096
        %v1099 = vstv %s1093
        %v1100 = vmul.f32 %v1099, %v1078
        %v1101 = vmul.f32 %v1099, %v1079
        %v1102 = vadd.f32 %v1097, %v1100
        %v1103 = vadd.f32 %v1098, %v1101
        %s1104 = sld [smem:[#allocation3 + $0x12]]
        %s1105 = sld [smem:[#allocation3 + $0x43]]
        %v1106 = vstv %s1104
        %v1107 = vmul.f32 %v1106, %v1066
        %v1108 = vmul.f32 %v1106, %v1067
        %v1109 = vadd.f32 %v823, %v1107
        %v1110 = vadd.f32 %v824, %v1108
        %v1111 = vstv %s1105
        %v1112 = vmul.f32 %v1111, %v1078
        %v1113 = vmul.f32 %v1111, %v1079
        %v1114 = vadd.f32 %v1109, %v1112
        %v1115 = vadd.f32 %v1110, %v1113
        %s1116 = sld [smem:[#allocation3 + $0x19]]
        %s1117 = sld [smem:[#allocation3 + $0x4a]]
        %v1118 = vstv %s1116
        %v1119 = vmul.f32 %v1118, %v1066
        %v1120 = vmul.f32 %v1118, %v1067
        %v1121 = vadd.f32 %v879, %v1119
        %v1122 = vadd.f32 %v880, %v1120
        %v1123 = vstv %s1117
        %v1124 = vmul.f32 %v1123, %v1078
        %v1125 = vmul.f32 %v1123, %v1079
        %v1126 = vadd.f32 %v1121, %v1124
        %v1127 = vadd.f32 %v1122, %v1125
        %s1128 = sld [smem:[#allocation3 + $0x20]]
        %s1129 = sld [smem:[#allocation3 + $0x51]]
        %v1130 = vstv %s1128
        %v1131 = vmul.f32 %v1130, %v1066
        %v1132 = vmul.f32 %v1130, %v1067
        %v1133 = vadd.f32 %v935, %v1131
        %v1134 = vadd.f32 %v936, %v1132
        %v1135 = vstv %s1129
        %v1136 = vmul.f32 %v1135, %v1078
        %v1137 = vmul.f32 %v1135, %v1079
        %v1138 = vadd.f32 %v1133, %v1136
        %v1139 = vadd.f32 %v1134, %v1137
        %s1140 = sld [smem:[#allocation3 + $0x27]]
        %s1141 = sld [smem:[#allocation3 + $0x58]]
        %v1142 = vstv %s1140
        %v1143 = vmul.f32 %v1142, %v1066
        %v1144 = vmul.f32 %v1142, %v1067
        %v1145 = vadd.f32 %v991, %v1143
        %v1146 = vadd.f32 %v992, %v1144
        %v1147 = vstv %s1141
        %v1148 = vmul.f32 %v1147, %v1078
        %v1149 = vmul.f32 %v1147, %v1079
        %v1150 = vadd.f32 %v1145, %v1148
        %v1151 = vadd.f32 %v1146, %v1149
        %s1152 = sld [smem:[#allocation3 + $0x2e]]
        %s1153 = sld [smem:[#allocation3 + $0x5f]]
        %v1154 = vstv %s1152
        %v1155 = vmul.f32 %v1154, %v1066
        %v1156 = vmul.f32 %v1154, %v1067
        %v1157 = vadd.f32 %v1047, %v1155
        %v1158 = vadd.f32 %v1048, %v1156
        %v1159 = vstv %s1153
        %v1160 = vmul.f32 %v1159, %v1078
        %v1161 = vmul.f32 %v1159, %v1079
        %v1162 = vadd.f32 %v1157, %v1160
        %v1163 = vadd.f32 %v1158, %v1161
        %vm1164 = vcmp.ge.s32.totalorder %v281, 4294967294
        %vm1165 = vcmp.ge.s32.totalorder %v282, 4294967294
        %vm1166 = vcmp.lt.s32.totalorder %v281, 14
        %vm1167 = vcmp.lt.s32.totalorder %v282, 14
        %vm1168 = vmand %vm1164, %vm1166
        %vm1169 = vmand %vm1165, %vm1167
        %1170 = vrot.lane.b32.xlu0 %v295, 78
        %v1171 = vpop.permute.xlu0 %1170
        %1172 = vrot.lane.b32.xlu0 %v299, 78
        %v1173 = vpop.permute.xlu0 %1172
        %1174 = vrot.lane.b32.xlu0 %v303, 78
        %v1175 = vpop.permute.xlu0 %1174
        %vm1176 = vcmask 637952
        %v1177 = vsel %vm1176, %v1171, %v1173
        %v1178 = vsel %vm1176, %v1173, %v1175
        %v1181 = vsel %vm1168, %v1177, 0.0
        %v1182 = vsel %vm1169, %v1178, 0.0
        %1183 = vrot.lane.b32.xlu0 %v321, 78
        %v1184 = vpop.permute.xlu0 %1183
        %1185 = vrot.lane.b32.xlu0 %v325, 78
        %v1186 = vpop.permute.xlu0 %1185
        %1187 = vrot.lane.b32.xlu0 %v329, 78
        %v1188 = vpop.permute.xlu0 %1187
        %v1189 = vsel %vm1176, %v1184, %v1186
        %v1190 = vsel %vm1176, %v1186, %v1188
        %v1193 = vsel %vm1168, %v1189, 0.0
        %v1194 = vsel %vm1169, %v1190, 0.0
        %s1195 = sld [smem:[#allocation3 + $0x5]]
        %s1196 = sld [smem:[#allocation3 + $0x36]]
        %v1197 = vstv %s1195
        %v1198 = vmul.f32 %v1197, %v1181
        %v1199 = vmul.f32 %v1197, %v1182
        %v1200 = vadd.f32 %v1090, %v1198
        %v1201 = vadd.f32 %v1091, %v1199
        %v1202 = vstv %s1196
        %v1203 = vmul.f32 %v1202, %v1193
        %v1204 = vmul.f32 %v1202, %v1194
        %v1205 = vadd.f32 %v1200, %v1203
        %v1206 = vadd.f32 %v1201, %v1204
        %s1207 = sld [smem:[#allocation3 + $0xc]]
        %s1208 = sld [smem:[#allocation3 + $0x3d]]
        %v1209 = vstv %s1207
        %v1210 = vmul.f32 %v1209, %v1181
        %v1211 = vmul.f32 %v1209, %v1182
        %v1212 = vadd.f32 %v1102, %v1210
        %v1213 = vadd.f32 %v1103, %v1211
        %v1214 = vstv %s1208
        %v1215 = vmul.f32 %v1214, %v1193
        %v1216 = vmul.f32 %v1214, %v1194
        %v1217 = vadd.f32 %v1212, %v1215
        %v1218 = vadd.f32 %v1213, %v1216
        %s1219 = sld [smem:[#allocation3 + $0x13]]
        %s1220 = sld [smem:[#allocation3 + $0x44]]
        %v1221 = vstv %s1219
        %v1222 = vmul.f32 %v1221, %v1181
        %v1223 = vmul.f32 %v1221, %v1182
        %v1224 = vadd.f32 %v1114, %v1222
        %v1225 = vadd.f32 %v1115, %v1223
        %v1226 = vstv %s1220
        %v1227 = vmul.f32 %v1226, %v1193
        %v1228 = vmul.f32 %v1226, %v1194
        %v1229 = vadd.f32 %v1224, %v1227
        %v1230 = vadd.f32 %v1225, %v1228
        %s1231 = sld [smem:[#allocation3 + $0x1a]]
        %s1232 = sld [smem:[#allocation3 + $0x4b]]
        %v1233 = vstv %s1231
        %v1234 = vmul.f32 %v1233, %v1181
        %v1235 = vmul.f32 %v1233, %v1182
        %v1236 = vadd.f32 %v1126, %v1234
        %v1237 = vadd.f32 %v1127, %v1235
        %v1238 = vstv %s1232
        %v1239 = vmul.f32 %v1238, %v1193
        %v1240 = vmul.f32 %v1238, %v1194
        %v1241 = vadd.f32 %v1236, %v1239
        %v1242 = vadd.f32 %v1237, %v1240
        %s1243 = sld [smem:[#allocation3 + $0x21]]
        %s1244 = sld [smem:[#allocation3 + $0x52]]
        %v1245 = vstv %s1243
        %v1246 = vmul.f32 %v1245, %v1181
        %v1247 = vmul.f32 %v1245, %v1182
        %v1248 = vadd.f32 %v1138, %v1246
        %v1249 = vadd.f32 %v1139, %v1247
        %v1250 = vstv %s1244
        %v1251 = vmul.f32 %v1250, %v1193
        %v1252 = vmul.f32 %v1250, %v1194
        %v1253 = vadd.f32 %v1248, %v1251
        %v1254 = vadd.f32 %v1249, %v1252
        %s1255 = sld [smem:[#allocation3 + $0x28]]
        %s1256 = sld [smem:[#allocation3 + $0x59]]
        %v1257 = vstv %s1255
        %v1258 = vmul.f32 %v1257, %v1181
        %v1259 = vmul.f32 %v1257, %v1182
        %v1260 = vadd.f32 %v1150, %v1258
        %v1261 = vadd.f32 %v1151, %v1259
        %v1262 = vstv %s1256
        %v1263 = vmul.f32 %v1262, %v1193
        %v1264 = vmul.f32 %v1262, %v1194
        %v1265 = vadd.f32 %v1260, %v1263
        %v1266 = vadd.f32 %v1261, %v1264
        %s1267 = sld [smem:[#allocation3 + $0x2f]]
        %s1268 = sld [smem:[#allocation3 + $0x60]]
        %v1269 = vstv %s1267
        %v1270 = vmul.f32 %v1269, %v1181
        %v1271 = vmul.f32 %v1269, %v1182
        %v1272 = vadd.f32 %v1162, %v1270
        %v1273 = vadd.f32 %v1163, %v1271
        %v1274 = vstv %s1268
        %v1275 = vmul.f32 %v1274, %v1193
        %v1276 = vmul.f32 %v1274, %v1194
        %v1277 = vadd.f32 %v1272, %v1275
        %v1278 = vadd.f32 %v1273, %v1276
        %vm1279 = vcmp.ge.s32.totalorder %v281, 4294967293
        %vm1280 = vcmp.ge.s32.totalorder %v282, 4294967293
        %vm1281 = vcmp.lt.s32.totalorder %v281, 13
        %vm1282 = vcmp.lt.s32.totalorder %v282, 13
        %vm1283 = vmand %vm1279, %vm1281
        %vm1284 = vmand %vm1280, %vm1282
        %1285 = vrot.lane.b32.xlu0 %v295, 77
        %v1286 = vpop.permute.xlu0 %1285
        %1287 = vrot.lane.b32.xlu0 %v299, 77
        %v1288 = vpop.permute.xlu0 %1287
        %1289 = vrot.lane.b32.xlu0 %v303, 77
        %v1290 = vpop.permute.xlu0 %1289
        %vm1291 = vcmask 629760
        %v1292 = vsel %vm1291, %v1286, %v1288
        %v1293 = vsel %vm1291, %v1288, %v1290
        %v1296 = vsel %vm1283, %v1292, 0.0
        %v1297 = vsel %vm1284, %v1293, 0.0
        %1298 = vrot.lane.b32.xlu0 %v321, 77
        %v1299 = vpop.permute.xlu0 %1298
        %1300 = vrot.lane.b32.xlu0 %v325, 77
        %v1301 = vpop.permute.xlu0 %1300
        %1302 = vrot.lane.b32.xlu0 %v329, 77
        %v1303 = vpop.permute.xlu0 %1302
        %v1304 = vsel %vm1291, %v1299, %v1301
        %v1305 = vsel %vm1291, %v1301, %v1303
        %v1308 = vsel %vm1283, %v1304, 0.0
        %v1309 = vsel %vm1284, %v1305, 0.0
        %s1310 = sld [smem:[#allocation3 + $0x6]]
        %s1311 = sld [smem:[#allocation3 + $0x37]]
        %v1312 = vstv %s1310
        %v1313 = vmul.f32 %v1312, %v1296
        %v1314 = vmul.f32 %v1312, %v1297
        %v1315 = vadd.f32 %v1205, %v1313
        %v1316 = vadd.f32 %v1206, %v1314
        %v1317 = vstv %s1311
        %v1318 = vmul.f32 %v1317, %v1308
        %v1319 = vmul.f32 %v1317, %v1309
        %v1320 = vadd.f32 %v1315, %v1318
        %v1321 = vadd.f32 %v1316, %v1319
        %s1322 = sld [smem:[#allocation3 + $0xd]]
        %s1323 = sld [smem:[#allocation3 + $0x3e]]
        %v1324 = vstv %s1322
        %v1325 = vmul.f32 %v1324, %v1296
        %v1326 = vmul.f32 %v1324, %v1297
        %v1327 = vadd.f32 %v1217, %v1325
        %v1328 = vadd.f32 %v1218, %v1326
        %v1329 = vstv %s1323
        %v1330 = vmul.f32 %v1329, %v1308
        %v1331 = vmul.f32 %v1329, %v1309
        %v1332 = vadd.f32 %v1327, %v1330
        %v1333 = vadd.f32 %v1328, %v1331
        %s1334 = sld [smem:[#allocation3 + $0x14]]
        %s1335 = sld [smem:[#allocation3 + $0x45]]
        %v1336 = vstv %s1334
        %v1337 = vmul.f32 %v1336, %v1296
        %v1338 = vmul.f32 %v1336, %v1297
        %v1339 = vadd.f32 %v1229, %v1337
        %v1340 = vadd.f32 %v1230, %v1338
        %v1341 = vstv %s1335
        %v1342 = vmul.f32 %v1341, %v1308
        %v1343 = vmul.f32 %v1341, %v1309
        %v1344 = vadd.f32 %v1339, %v1342
        %v1345 = vadd.f32 %v1340, %v1343
        %s1346 = sld [smem:[#allocation3 + $0x1b]]
        %s1347 = sld [smem:[#allocation3 + $0x4c]]
        %v1348 = vstv %s1346
        %v1349 = vmul.f32 %v1348, %v1296
        %v1350 = vmul.f32 %v1348, %v1297
        %v1351 = vadd.f32 %v1241, %v1349
        %v1352 = vadd.f32 %v1242, %v1350
        %v1353 = vstv %s1347
        %v1354 = vmul.f32 %v1353, %v1308
        %v1355 = vmul.f32 %v1353, %v1309
        %v1356 = vadd.f32 %v1351, %v1354
        %v1357 = vadd.f32 %v1352, %v1355
        %s1358 = sld [smem:[#allocation3 + $0x22]]
        %s1359 = sld [smem:[#allocation3 + $0x53]]
        %v1360 = vstv %s1358
        %v1361 = vmul.f32 %v1360, %v1296
        %v1362 = vmul.f32 %v1360, %v1297
        %v1363 = vadd.f32 %v1253, %v1361
        %v1364 = vadd.f32 %v1254, %v1362
        %v1365 = vstv %s1359
        %v1366 = vmul.f32 %v1365, %v1308
        %v1367 = vmul.f32 %v1365, %v1309
        %v1368 = vadd.f32 %v1363, %v1366
        %v1369 = vadd.f32 %v1364, %v1367
        %s1370 = sld [smem:[#allocation3 + $0x29]]
        %s1371 = sld [smem:[#allocation3 + $0x5a]]
        %v1372 = vstv %s1370
        %v1373 = vmul.f32 %v1372, %v1296
        %v1374 = vmul.f32 %v1372, %v1297
        %v1375 = vadd.f32 %v1265, %v1373
        %v1376 = vadd.f32 %v1266, %v1374
        %v1377 = vstv %s1371
        %v1378 = vmul.f32 %v1377, %v1308
        %v1379 = vmul.f32 %v1377, %v1309
        %v1380 = vadd.f32 %v1375, %v1378
        %v1381 = vadd.f32 %v1376, %v1379
        %s1382 = sld [smem:[#allocation3 + $0x30]]
        %s1383 = sld [smem:[#allocation3 + $0x61]]
        %v1384 = vstv %s1382
        %v1385 = vmul.f32 %v1384, %v1296
        %v1386 = vmul.f32 %v1384, %v1297
        %v1387 = vadd.f32 %v1277, %v1385
        %v1388 = vadd.f32 %v1278, %v1386
        %v1389 = vstv %s1383
        %v1390 = vmul.f32 %v1389, %v1308
        %v1391 = vmul.f32 %v1389, %v1309
        %v1392 = vadd.f32 %v1387, %v1390
        %v1393 = vadd.f32 %v1388, %v1391
        %v1396 = vcombine.low %v1320, %v1321
        %v1398 = vunpack.c.l.s4 1966171168
        %v1399 = vunpack.c.0.s8 %v1398
        %v1400 = vlaneseq
        %v1401 = vshrl.u32 %v1400, 7
        %v1402 = vsub.s32 %v1399, %v1401
        %v1403 = vrot.slane %v1396, %v1402
        %v1405 = vunpack.c.l.s4 1966171168
        %v1406 = vunpack.c.0.s8 %v1405
        %v1407 = vlaneseq
        %v1408 = vshrl.u32 %v1407, 7
        %v1409 = vsub.s32 %v1406, %v1408
        %v1410 = vrot.slane %v1403, %v1409
        %1411 = vrot.lane.b32.xlu0 %v1410, 48
        %v1412 = vpop.permute.xlu0 %1411
        %v1413 = vrot.slane %v1412, 7
        %v1414 = vsel %vm226, %v1413, %v1412
        %s1416 = scalar_lea.vmem [#allocation2], 6
        %1417 = vst.msk [vmem:[%s1416] sm:$0x7] %vm230, %v1414
        %v1418 = vld [vmem:[%s1416] sm:$0x3]
        %v1419 = vadd.f32 %v1418, 0.0
        %v1422 = vcombine.low %v1332, %v1333
        %v1424 = vunpack.c.l.s4 1966171168
        %v1425 = vunpack.c.0.s8 %v1424
        %v1426 = vlaneseq
        %v1427 = vshrl.u32 %v1426, 7
        %v1428 = vsub.s32 %v1425, %v1427
        %v1429 = vrot.slane %v1422, %v1428
        %v1431 = vunpack.c.l.s4 1966171168
        %v1432 = vunpack.c.0.s8 %v1431
        %v1433 = vlaneseq
        %v1434 = vshrl.u32 %v1433, 7
        %v1435 = vsub.s32 %v1432, %v1434
        %v1436 = vrot.slane %v1429, %v1435
        %1437 = vrot.lane.b32.xlu0 %v1436, 48
        %v1438 = vpop.permute.xlu0 %1437
        %v1439 = vrot.slane %v1438, 7
        %v1440 = vsel %vm226, %v1439, %v1438
        %1442 = vst.msk [vmem:[%s1416] sm:$0x7] %vm230, %v1440
        %v1443 = vld [vmem:[%s1416] sm:$0x7]
        %1445 = vrot.lane.b32.xlu0 %v1443, 112
        %v1446 = vpop.permute.xlu0 %1445
        %v1447 = vrot.slane %v1446, 1
        %vm1448 = vcmask 916480
        %v1449 = vsel %vm1448, %v1446, %v1447
        %v1451 = vadd.f32 %v1419, %v1449
        %v1454 = vcombine.low %v1344, %v1345
        %v1456 = vunpack.c.l.s4 1966171168
        %v1457 = vunpack.c.0.s8 %v1456
        %v1458 = vlaneseq
        %v1459 = vshrl.u32 %v1458, 7
        %v1460 = vsub.s32 %v1457, %v1459
        %v1461 = vrot.slane %v1454, %v1460
        %v1463 = vunpack.c.l.s4 1966171168
        %v1464 = vunpack.c.0.s8 %v1463
        %v1465 = vlaneseq
        %v1466 = vshrl.u32 %v1465, 7
        %v1467 = vsub.s32 %v1464, %v1466
        %v1468 = vrot.slane %v1461, %v1467
        %1469 = vrot.lane.b32.xlu0 %v1468, 48
        %v1470 = vpop.permute.xlu0 %1469
        %v1471 = vrot.slane %v1470, 7
        %v1472 = vsel %vm226, %v1471, %v1470
        %1474 = vst.msk [vmem:[%s1416] sm:$0x7] %vm230, %v1472
        %v1475 = vld [vmem:[%s1416] sm:$0x7]
        %1477 = vrot.lane.b32.xlu0 %v1475, 96
        %v1478 = vpop.permute.xlu0 %1477
        %v1479 = vrot.slane %v1478, 1
        %vm1480 = vcmask 785408
        %v1481 = vsel %vm1480, %v1478, %v1479
        %v1483 = vadd.f32 %v1451, %v1481
        %v1486 = vcombine.low %v1356, %v1357
        %v1488 = vunpack.c.l.s4 1966171168
        %v1489 = vunpack.c.0.s8 %v1488
        %v1490 = vlaneseq
        %v1491 = vshrl.u32 %v1490, 7
        %v1492 = vsub.s32 %v1489, %v1491
        %v1493 = vrot.slane %v1486, %v1492
        %v1495 = vunpack.c.l.s4 1966171168
        %v1496 = vunpack.c.0.s8 %v1495
        %v1497 = vlaneseq
        %v1498 = vshrl.u32 %v1497, 7
        %v1499 = vsub.s32 %v1496, %v1498
        %v1500 = vrot.slane %v1493, %v1499
        %v1502 = vadd.f32 %v1483, %v1500
        %v1505 = vcombine.low %v1368, %v1369
        %v1507 = vunpack.c.l.s4 1966171168
        %v1508 = vunpack.c.0.s8 %v1507
        %v1509 = vlaneseq
        %v1510 = vshrl.u32 %v1509, 7
        %v1511 = vsub.s32 %v1508, %v1510
        %v1512 = vrot.slane %v1505, %v1511
        %v1514 = vunpack.c.l.s4 1966171168
        %v1515 = vunpack.c.0.s8 %v1514
        %v1516 = vlaneseq
        %v1517 = vshrl.u32 %v1516, 7
        %v1518 = vsub.s32 %v1515, %v1517
        %v1519 = vrot.slane %v1512, %v1518
        %1520 = vrot.lane.b32.xlu0 %v1519, 48
        %v1521 = vpop.permute.xlu0 %1520
        %v1522 = vrot.slane %v1521, 7
        %v1523 = vsel %vm226, %v1522, %v1521
        %1525 = vst.msk [vmem:[%s1416] sm:$0x7] %vm230, %v1523
        %v1526 = vld [vmem:[%s1416] sm:$0x7]
        %1528 = vrot.lane.b32.xlu0 %v1526, 64
        %v1529 = vpop.permute.xlu0 %1528
        %v1530 = vrot.slane %v1529, 1
        %vm1531 = vcmask 523264
        %v1532 = vsel %vm1531, %v1529, %v1530
        %v1534 = vadd.f32 %v1502, %v1532
        %v1537 = vcombine.low %v1380, %v1381
        %v1539 = vunpack.c.l.s4 1966171168
        %v1540 = vunpack.c.0.s8 %v1539
        %v1541 = vlaneseq
        %v1542 = vshrl.u32 %v1541, 7
        %v1543 = vsub.s32 %v1540, %v1542
        %v1544 = vrot.slane %v1537, %v1543
        %v1546 = vunpack.c.l.s4 1966171168
        %v1547 = vunpack.c.0.s8 %v1546
        %v1548 = vlaneseq
        %v1549 = vshrl.u32 %v1548, 7
        %v1550 = vsub.s32 %v1547, %v1549
        %v1551 = vrot.slane %v1544, %v1550
        %1552 = vrot.lane.b32.xlu0 %v1551, 48
        %v1553 = vpop.permute.xlu0 %1552
        %v1554 = vrot.slane %v1553, 7
        %v1555 = vsel %vm226, %v1554, %v1553
        %1557 = vst.msk [vmem:[%s1416] sm:$0x7] %vm230, %v1555
        %v1558 = vld [vmem:[%s1416] sm:$0x7]
        %1560 = vrot.lane.b32.xlu0 %v1558, 48
        %v1561 = vpop.permute.xlu0 %1560
        %v1562 = vrot.slane %v1561, 1
        %v1563 = vsel %vm226, %v1561, %v1562
        %v1565 = vadd.f32 %v1534, %v1563
        %v1568 = vcombine.low %v1392, %v1393
        %v1570 = vunpack.c.l.s4 1966171168
        %v1571 = vunpack.c.0.s8 %v1570
        %v1572 = vlaneseq
        %v1573 = vshrl.u32 %v1572, 7
        %v1574 = vsub.s32 %v1571, %v1573
        %v1575 = vrot.slane %v1568, %v1574
        %v1577 = vunpack.c.l.s4 1966171168
        %v1578 = vunpack.c.0.s8 %v1577
        %v1579 = vlaneseq
        %v1580 = vshrl.u32 %v1579, 7
        %v1581 = vsub.s32 %v1578, %v1580
        %v1582 = vrot.slane %v1575, %v1581
        %1583 = vrot.lane.b32.xlu0 %v1582, 48
        %v1584 = vpop.permute.xlu0 %1583
        %v1585 = vrot.slane %v1584, 7
        %v1586 = vsel %vm226, %v1585, %v1584
        %1588 = vst.msk [vmem:[%s1416] sm:$0x7] %vm230, %v1586
        %v1589 = vld [vmem:[%s1416] sm:$0x7]
        %1591 = vrot.lane.b32.xlu0 %v1589, 32
        %v1592 = vpop.permute.xlu0 %1591
        %v1593 = vrot.slane %v1592, 1
        %vm1594 = vcmask 261120
        %v1595 = vsel %vm1594, %v1592, %v1593
        %v1597 = vadd.f32 %v1565, %v1595
        %v1598 = vxor.u32 %v1597, 2147483648
        %v1599 = vmul.f32 %v1598, 1.442695
        %v1600 = vpow.pop %v1599
        %v1601 = vadd.f32 %v1600, 1.0
        %v1602 = vrcp.pop %v1601
        %v1603 = vmul.f32 1.0, %v1602
        %v1604 = vld [vmem:[%s152] sm:$0xff]
        %v1606 = vlaneseq
        %v1607 = vshrl.u32 %v1606, 7
        %v1608 = vsub.s32 0, %v1607
        %v1609 = vrot.slane %v1603, %v1608
        %v1610 = vlaneseq
        %v1611 = vshrl.u32 %v1610, 7
        %v1612 = vsub.s32 1, %v1611
        %v1613 = vrot.slane %v1603, %v1612
        %v1614 = vcombine.low %v1609, %v1613
        %v1616 = vmul.f32 %v1604, %v1614
        %1617 = vst [vmem:[%s157] sm:$0xff] %v1616
        %p1618 = scmp.lt.s32.totalorder %s14, 1
        %s1619 = scalar_select %p1618, %s14, 1
        %s1620 = smul.addr %s1619, 2
        %s1621 = smul.addr %s1620, 4
        %s1622 = scalar_lea.vmem %s2, %s1621
        // Predicated region
        $region33: #{_spatial_attention_impl.1} parent=27 // pred_check
          %p1623 = pneg %p79
        $region34: #{_spatial_attention_impl.1} parent=27 // pred_check_branch
          %1625 = sbr.rel (%p1623) target = $region36
        $region35: #{_spatial_attention_impl.1} parent=27 // pred_region
          _
        $region36: #{_spatial_attention_impl.1} parent=27 // pred_fallthru
          _
      $region28: #{_spatial_attention_impl.1} parent=5 // pred_fallthru
        _
      %p1626 = scmp.le.s32.totalorder 2, %s9
      // Predicated region
      $region37: #{_spatial_attention_impl.1} parent=5 // pred_check
        %p1627 = pneg %p1626
      $region38: #{_spatial_attention_impl.1} parent=5 // pred_check_branch
        %1629 = sbr.rel (%p1627) target = $region40
      $region39: #{_spatial_attention_impl.1} parent=5 // pred_region
        %s1630 = ssub.s32 %s9, 2
        // Predicated region
        $region41: #{_spatial_attention_impl.1} parent=39 // pred_check
          %p1631 = pneg %p85
        $region42: #{_spatial_attention_impl.1} parent=39 // pred_check_branch
          %1633 = sbr.rel (%p1631) target = $region44
        $region43: #{_spatial_attention_impl.1} parent=39 // pred_region
          %p1634 = scmp.lt.s32.totalorder %s15, 1
          %s1635 = scalar_select %p1634, %s15, 1
          %s1636 = smul.addr %s1635, 2
          %s1637 = smul.addr %s1636, 4
          %s1638 = scalar_lea.vmem %s2, %s1637
        $region44: #{_spatial_attention_impl.1} parent=39 // pred_fallthru
          _
      $region40: #{_spatial_attention_impl.1} parent=5 // pred_fallthru
        _
    $region6: #{_spatial_attention_impl.1} parent=1 // loop_footer
      %s13 = sadd.s32 1, %s9
    $region7: #{_spatial_attention_impl.1} parent=1 // loop_footer_branch
      %8 = sbr.rel target = $region3
    $region8: #{_spatial_attention_impl.1} parent=1 // loop_exit
      _
    %1639 = vsyncpa [#allocation4], 1
    %s1640 = scalar_lea.sflag [#allocation4], 1
    %1641 = vsyncpa %s1640, 1

</llo_original>
